<compile_context>
chip_gen: v7x
topology: tpu7x:2x2x1
jax: 0.10.0
libtpu: 0.0.40
codegen_flags: <defaults>
</compile_context>

<pallas_src>
import functools

import jax
import jax.numpy as jnp
from jax import lax
from jax.experimental import pallas as pl
from jax.experimental.pallas import tpu as pltpu

MID = 24            # readout hidden factor from the reference module
LANE = 128          # TPU lane width: readout hidden / output widths are padded to this
NEG_BIG = -1e30     # additive mask value for non-edges


def _round_up(v, m=LANE):
    return ((v + m - 1) // m) * m


def _tanhshrink(x):
    return x - jnp.tanh(x)


# ----------------------------------------------------------------------------
# Kernel
# ----------------------------------------------------------------------------
def _attention(x_bf16, adj_bias, w_packed, b_packed, heads):
    """One TransformerConv layer (concat=True, root_weight=True, beta=False).

    x_bf16:   [N, Cin] bf16 node features
    adj_bias: [N, N]   f32 additive mask, 0 for edge (target row, source col), -1e30 otherwise
    w_packed: [Cin, 4*C] bf16, columns = [Wq | Wk | Wv | Wskip]
    b_packed: [1, 4*C]   f32 packed biases
    Returns f32 [N, C] (attention aggregation + root/skip).
    """
    c = w_packed.shape[1] // 4
    hd = c // heads
    scale = 1.0 / float(hd) ** 0.5

    # Single packed MXU matmul for q | k | v | skip.
    qkvs = jnp.dot(x_bf16, w_packed, preferred_element_type=jnp.float32) + b_packed
    q = qkvs[:, 0 * c:1 * c]
    k = qkvs[:, 1 * c:2 * c]
    v = qkvs[:, 2 * c:3 * c]
    skip = qkvs[:, 3 * c:4 * c]

    outs = []
    for h in range(heads):                      # static unroll (heads is 1 or 2)
        sl = slice(h * hd, (h + 1) * hd)
        qh = (q[:, sl] * scale).astype(jnp.bfloat16)   # fold 1/sqrt(hd) into q (N*hd, not N*N)
        kh = k[:, sl].astype(jnp.bfloat16)
        vh = v[:, sl].astype(jnp.bfloat16)
        # scores over incoming neighbours: s[i, j] = <q_i, k_j> / sqrt(hd)
        s = lax.dot_general(qh, kh, (((1,), (1,)), ((), ())),
                            preferred_element_type=jnp.float32)
        s = s + adj_bias                        # non-edges pushed to ~ -1e30
        m = jnp.maximum(jnp.max(s, axis=-1, keepdims=True), -1e20)
        p = jnp.exp(s - m)                      # masked lanes underflow to exactly 0
        denom = jnp.sum(p, axis=-1, keepdims=True)
        inv = pl.reciprocal(jnp.where(denom > 0.0, denom, 1.0), approx=True)
        o = jnp.dot(p.astype(jnp.bfloat16), vh, preferred_element_type=jnp.float32)
        outs.append(o * inv)

    attn = outs[0] if heads == 1 else jnp.concatenate(outs, axis=-1)
    return attn + skip


def netgat_kernel(x_ref, adjb_ref,
                  w1_ref, b1_ref, w2_ref, b2_ref,
                  wr1_ref, br1_ref, wr2_ref, br2_ref, wr3_ref, br3_ref,
                  out_ref, *, heads1):
    x = x_ref[...].astype(jnp.bfloat16)           # [N, Cin]   (graph axis squeezed)
    adjb = adjb_ref[...].astype(jnp.float32)      # [N, N], materialized once, reused by both convs

    # conv1 (heads=2)  and  conv2 (heads=1).  conv3 of the reference module is dead code.
    x1 = _attention(x, adjb, w1_ref[...], b1_ref[...], heads=heads1)
    x2 = _attention(x1.astype(jnp.bfloat16), adjb, w2_ref[...], b2_ref[...], heads=1)

    # readout MLP on x2 (lane-padded to 128-wide intermediates / output).
    h = jnp.dot(x2.astype(jnp.bfloat16), wr1_ref[...],
                preferred_element_type=jnp.float32) + br1_ref[...]
    h = _tanhshrink(h)
    h = jnp.dot(h.astype(jnp.bfloat16), wr2_ref[...],
                preferred_element_type=jnp.float32) + br2_ref[...]
    h = _tanhshrink(h)
    out = jnp.dot(h.astype(jnp.bfloat16), wr3_ref[...],
                  preferred_element_type=jnp.float32) + br3_ref[...]
    out_ref[...] = out.astype(out_ref.dtype)      # [N, 128] lane-dense (unmasked) store


def _full_spec(a):
    nd = a.ndim
    return pl.BlockSpec(a.shape, lambda g, _nd=nd: (0,) * _nd)


def netgat_forward(x_bf16, adj_bias_bf16, packed_params, *, heads1=2):
    """x_bf16: [G, N, Cin] bf16;  adj_bias_bf16: [G, N, N] bf16;  returns [G, N, 128] f32."""
    g_count, n_nodes, c_in = x_bf16.shape
    out_pad = packed_params[-2].shape[1]          # padded readout output width (128)

    kernel = functools.partial(netgat_kernel, heads1=heads1)
    in_specs = ([pl.BlockSpec((None, n_nodes, c_in), lambda g: (g, 0, 0)),
                 pl.BlockSpec((None, n_nodes, n_nodes), lambda g: (g, 0, 0))]
                + [_full_spec(p) for p in packed_params])

    return pl.pallas_call(
        kernel,
        grid=(g_count,),
        in_specs=in_specs,
        out_specs=pl.BlockSpec((None, n_nodes, out_pad), lambda g: (g, 0, 0)),
        out_shape=jax.ShapeDtypeStruct((g_count, n_nodes, out_pad), jnp.float32),
        compiler_params=pltpu.CompilerParams(
            dimension_semantics=("parallel",),        # graphs are independent -> 2nd TC on v7x
            vmem_limit_bytes=32 * 1024 * 1024),
    )(x_bf16, adj_bias_bf16, *packed_params)


# ----------------------------------------------------------------------------
# Parameters
# ----------------------------------------------------------------------------
def _linear(key, fan_in, fan_out, scale=0.2):
    kw, kb = jax.random.split(key)
    w = jax.random.normal(kw, (fan_in, fan_out), jnp.float32) * scale
    b = jax.random.normal(kb, (1, fan_out), jnp.float32) * scale
    return w, b


def build_raw_params(key, in_channels, hidden, out_channels, heads=2, mid_=MID):
    c2 = hidden * heads
    keys = iter(jax.random.split(key, 16))
    p = {}
    for name in ("q1", "k1", "v1", "s1"):
        p[name] = _linear(next(keys), in_channels, c2)
    for name in ("q2", "k2", "v2", "s2"):
        p[name] = _linear(next(keys), c2, c2)
    p["r1"] = _linear(next(keys), c2, mid_ * heads)
    p["r2"] = _linear(next(keys), mid_ * heads, mid_ * heads)
    p["r3"] = _linear(next(keys), mid_ * heads, out_channels)
    return p


def pack_params(raw):
    """Pack q|k|v|skip per conv, pad readout widths to 128 lanes, cast weights to bf16."""
    def cat_w(names):
        return jnp.concatenate([raw[n][0] for n in names], axis=1)

    def cat_b(names):
        return jnp.concatenate([raw[n][1] for n in names], axis=1)

    def pad2(a, rows, cols):
        return jnp.pad(a, ((0, rows - a.shape[0]), (0, cols - a.shape[1])))

    w1, b1 = cat_w(("q1", "k1", "v1", "s1")), cat_b(("q1", "k1", "v1", "s1"))
    w2, b2 = cat_w(("q2", "k2", "v2", "s2")), cat_b(("q2", "k2", "v2", "s2"))

    wr1, br1 = raw["r1"]
    wr2, br2 = raw["r2"]
    wr3, br3 = raw["r3"]
    hid = _round_up(wr1.shape[1])        # 48  -> 128
    out_pad = _round_up(wr3.shape[1])    # out_channels -> 128

    wr1p, br1p = pad2(wr1, wr1.shape[0], hid), pad2(br1, 1, hid)
    wr2p, br2p = pad2(wr2, hid, hid), pad2(br2, 1, hid)
    wr3p, br3p = pad2(wr3, hid, out_pad), pad2(br3, 1, out_pad)

    bf = lambda a: a.astype(jnp.bfloat16)
    return [bf(w1), b1, bf(w2), b2,
            bf(wr1p), br1p, bf(wr2p), br2p, bf(wr3p), br3p]


def edge_index_to_adj(edge_index, num_nodes):
    src, tgt = edge_index[0], edge_index[1]
    adj = jnp.zeros((num_nodes, num_nodes), jnp.float32)
    return adj.at[tgt, src].set(1.0)              # adj[target, source]


# ----------------------------------------------------------------------------
# Pure-JAX reference (unpacked, per-head, f32 activations) for correctness check
# ----------------------------------------------------------------------------
def _transformer_conv_ref(x, adj, wq, bq, wk, bk, wv, bv, ws, bs, heads):
    hd = wq.shape[1] // heads
    q = x @ wq + bq
    k = x @ wk + bk
    v = x @ wv + bv
    mask = adj > 0.5
    scale = 1.0 / jnp.sqrt(jnp.float32(hd))
    outs = []
    for h in range(heads):
        sl = slice(h * hd, (h + 1) * hd)
        s = (q[:, sl] @ k[:, sl].T) * scale
        s_m = jnp.where(mask, s, -jnp.inf)
        m = jnp.max(s_m, axis=-1, keepdims=True)
        m = jnp.where(jnp.isfinite(m), m, 0.0)
        p = jnp.where(mask, jnp.exp(s - m), 0.0)
        den = jnp.sum(p, axis=-1, keepdims=True)
        den = jnp.where(den > 0.0, den, 1.0)
        outs.append((p @ v[:, sl]) / den)
    attn = outs[0] if heads == 1 else jnp.concatenate(outs, axis=-1)
    return attn + x @ ws + bs


def netgat_ref(x, adj, raw, heads=2):
    x1 = _transformer_conv_ref(x, adj, *raw["q1"], *raw["k1"], *raw["v1"], *raw["s1"], heads=heads)
    x2 = _transformer_conv_ref(x1, adj, *raw["q2"], *raw["k2"], *raw["v2"], *raw["s2"], heads=1)
    h = _tanhshrink(x2 @ raw["r1"][0] + raw["r1"][1])
    h = _tanhshrink(h @ raw["r2"][0] + raw["r2"][1])
    return h @ raw["r3"][0] + raw["r3"][1]


# ----------------------------------------------------------------------------
if __name__ == "__main__":
    key = jax.random.PRNGKey(0)
    k_x, k_p = jax.random.split(key, 2)

    num_graphs = 2           # batched along a "parallel" grid axis
    num_nodes = 16           # per graph (multiple of 8 sublanes)
    in_channels = 8
    hidden_channels = 16
    out_channels = 4
    heads = 2

    # Node features [G, N, Cin]
    x = jax.random.normal(k_x, (num_graphs, num_nodes, in_channels), jnp.float32)

    # Two small deterministic graphs: bidirectional ring + a few extra edges.
    def ring_edges(n, extra_src, extra_tgt):
        src = list(range(n)) + [(i + 1) % n for i in range(n)] + extra_src
        tgt = [(i + 1) % n for i in range(n)] + list(range(n)) + extra_tgt
        return jnp.array([src, tgt], dtype=jnp.int32)

    edge_indices = [
        ring_edges(num_nodes, [0, 3, 7, 11, 5, 9], [8, 12, 2, 4, 14, 1]),
        ring_edges(num_nodes, [2, 6, 10, 13, 1, 4], [9, 0, 5, 3, 11, 15]),
    ]
    adj = jnp.stack([edge_index_to_adj(e, num_nodes) for e in edge_indices])   # [G, N, N]

    raw = build_raw_params(k_p, in_channels, hidden_channels, out_channels, heads)
    packed = pack_params(raw)

    # Kernel inputs: bf16 features, bf16 additive adjacency bias (0 edge / -1e30 non-edge).
    x_bf16 = x.astype(jnp.bfloat16)
    adj_bias = jnp.where(adj > 0.5, 0.0, NEG_BIG).astype(jnp.bfloat16)

    out_padded = netgat_forward(x_bf16, adj_bias, packed, heads1=heads)
    out_padded = jax.block_until_ready(out_padded)
    out = out_padded[..., :out_channels]

    # Reference with the same bf16-rounded weights/inputs, f32 math.
    raw_r = {k_: (w.astype(jnp.bfloat16).astype(jnp.float32), b) for k_, (w, b) in raw.items()}
    x_f32 = x_bf16.astype(jnp.float32)
    ref = jnp.stack([netgat_ref(x_f32[g], adj[g], raw_r, heads) for g in range(num_graphs)])

    assert out_padded.shape == (num_graphs, num_nodes, LANE)
    assert bool(jnp.all(jnp.isfinite(out_padded)))
    # Zero-padded output lanes must stay (numerically) zero.
    assert float(jnp.max(jnp.abs(out_padded[..., out_channels:]))) < 1e-6
    assert bool(jnp.allclose(out, ref, atol=2e-2, rtol=2e-2))

    print("KERNEL_OK")
</pallas_src>

<mosaic_0001>
module attributes {stable_mosaic.version = 11 : i64} {
  func.func @netgat_kernel(%arg0: i32, %arg1: memref<1x16x8xbf16, #tpu.memory_space<vmem>>, %arg2: memref<1x16x16xbf16, #tpu.memory_space<vmem>>, %arg3: memref<8x128xbf16, #tpu.memory_space<vmem>>, %arg4: memref<1x128xf32, #tpu.memory_space<vmem>>, %arg5: memref<32x128xbf16, #tpu.memory_space<vmem>>, %arg6: memref<1x128xf32, #tpu.memory_space<vmem>>, %arg7: memref<32x128xbf16, #tpu.memory_space<vmem>>, %arg8: memref<1x128xf32, #tpu.memory_space<vmem>>, %arg9: memref<128x128xbf16, #tpu.memory_space<vmem>>, %arg10: memref<1x128xf32, #tpu.memory_space<vmem>>, %arg11: memref<128x128xbf16, #tpu.memory_space<vmem>>, %arg12: memref<1x128xf32, #tpu.memory_space<vmem>>, %arg13: memref<1x16x128xf32, #tpu.memory_space<vmem>>) attributes {dimension_semantics = [#tpu.dimension_semantics<parallel>], iteration_bounds = array<i64: 2>, scalar_prefetch = 0 : i64, scratch_operands = 0 : i64, tpu.core_type = #tpu.core_type<tc>, window_params = [{transform_indices = @transform_0, window_bounds = array<i64: 1, 16, 8>}, {transform_indices = @transform_1, window_bounds = array<i64: 1, 16, 16>}, {pipeline_mode = #tpu.pipeline_mode<synchronous>, transform_indices = @transform_2, window_bounds = array<i64: 8, 128>}, {pipeline_mode = #tpu.pipeline_mode<synchronous>, transform_indices = @transform_3, window_bounds = array<i64: 1, 128>}, {pipeline_mode = #tpu.pipeline_mode<synchronous>, transform_indices = @transform_4, window_bounds = array<i64: 32, 128>}, {pipeline_mode = #tpu.pipeline_mode<synchronous>, transform_indices = @transform_5, window_bounds = array<i64: 1, 128>}, {pipeline_mode = #tpu.pipeline_mode<synchronous>, transform_indices = @transform_6, window_bounds = array<i64: 32, 128>}, {pipeline_mode = #tpu.pipeline_mode<synchronous>, transform_indices = @transform_7, window_bounds = array<i64: 1, 128>}, {pipeline_mode = #tpu.pipeline_mode<synchronous>, transform_indices = @transform_8, window_bounds = array<i64: 128, 128>}, {pipeline_mode = #tpu.pipeline_mode<synchronous>, transform_indices = @transform_9, window_bounds = array<i64: 1, 128>}, {pipeline_mode = #tpu.pipeline_mode<synchronous>, transform_indices = @transform_10, window_bounds = array<i64: 128, 128>}, {pipeline_mode = #tpu.pipeline_mode<synchronous>, transform_indices = @transform_11, window_bounds = array<i64: 1, 128>}, {transform_indices = @transform_12, window_bounds = array<i64: 1, 16, 128>}]} {
    %c0 = arith.constant 0 : index
    %c0_0 = arith.constant 0 : index
    %c0_1 = arith.constant 0 : index
    %0 = vector.load %arg1[%c0, %c0_0, %c0_1] : memref<1x16x8xbf16, #tpu.memory_space<vmem>>, vector<1x16x8xbf16>
    %1 = vector.shape_cast %0 : vector<1x16x8xbf16> to vector<16x8xbf16>
    %c0_2 = arith.constant 0 : index
    %c0_3 = arith.constant 0 : index
    %c0_4 = arith.constant 0 : index
    %2 = vector.load %arg2[%c0_2, %c0_3, %c0_4] : memref<1x16x16xbf16, #tpu.memory_space<vmem>>, vector<1x16x16xbf16>
    %3 = vector.shape_cast %2 : vector<1x16x16xbf16> to vector<16x16xbf16>
    %4 = arith.extf %3 : vector<16x16xbf16> to vector<16x16xf32>
    %c0_5 = arith.constant 0 : index
    %c0_6 = arith.constant 0 : index
    %5 = vector.load %arg3[%c0_5, %c0_6] : memref<8x128xbf16, #tpu.memory_space<vmem>>, vector<8x128xbf16>
    %c0_7 = arith.constant 0 : index
    %c0_8 = arith.constant 0 : index
    %6 = vector.load %arg4[%c0_7, %c0_8] : memref<1x128xf32, #tpu.memory_space<vmem>>, vector<1x128xf32>
    %cst = arith.constant dense<0.000000e+00> : vector<16x128xf32>
    %7 = tpu.matmul %1, %5, %cst {dimension_numbers = #tpu.dot_dimension_numbers<[1], [0], [0], [1], [0, 0, 1, 1], [], []>} : vector<16x8xbf16>, vector<8x128xbf16>, vector<16x128xf32> -> vector<16x128xf32>
    %8 = vector.broadcast %6 : vector<1x128xf32> to vector<16x128xf32>
    %9 = arith.addf %7, %8 : vector<16x128xf32>
    %10 = vector.extract_strided_slice %9 {offsets = [0, 0], sizes = [16, 32], strides = [1, 1]} : vector<16x128xf32> to vector<16x32xf32>
    %11 = vector.extract_strided_slice %9 {offsets = [0, 32], sizes = [16, 32], strides = [1, 1]} : vector<16x128xf32> to vector<16x32xf32>
    %12 = vector.extract_strided_slice %9 {offsets = [0, 64], sizes = [16, 32], strides = [1, 1]} : vector<16x128xf32> to vector<16x32xf32>
    %13 = vector.extract_strided_slice %9 {offsets = [0, 96], sizes = [16, 32], strides = [1, 1]} : vector<16x128xf32> to vector<16x32xf32>
    %14 = vector.extract_strided_slice %10 {offsets = [0, 0], sizes = [16, 16], strides = [1, 1]} : vector<16x32xf32> to vector<16x16xf32>
    %cst_9 = arith.constant 2.500000e-01 : f32
    %15 = vector.broadcast %cst_9 : f32 to vector<16x16xf32>
    %16 = arith.mulf %14, %15 : vector<16x16xf32>
    %17 = arith.truncf %16 : vector<16x16xf32> to vector<16x16xbf16>
    %18 = vector.extract_strided_slice %11 {offsets = [0, 0], sizes = [16, 16], strides = [1, 1]} : vector<16x32xf32> to vector<16x16xf32>
    %19 = arith.truncf %18 : vector<16x16xf32> to vector<16x16xbf16>
    %20 = vector.extract_strided_slice %12 {offsets = [0, 0], sizes = [16, 16], strides = [1, 1]} : vector<16x32xf32> to vector<16x16xf32>
    %21 = arith.truncf %20 : vector<16x16xf32> to vector<16x16xbf16>
    %cst_10 = arith.constant dense<0.000000e+00> : vector<16x16xf32>
    %22 = tpu.matmul %17, %19, %cst_10 {dimension_numbers = #tpu.dot_dimension_numbers<[1], [1], [0], [0], [0, 0, 1, 0], [], []>} : vector<16x16xbf16>, vector<16x16xbf16>, vector<16x16xf32> -> vector<16x16xf32>
    %23 = arith.addf %22, %4 : vector<16x16xf32>
    %cst_11 = arith.constant dense<0xFF800000> : vector<16xf32>
    %24 = vector.multi_reduction <maximumf>, %23, %cst_11 [1] : vector<16x16xf32> to vector<16xf32>
    %25 = vector.shape_cast %24 : vector<16xf32> to vector<16x1xf32>
    %cst_12 = arith.constant -1.000000e+20 : f32
    %26 = vector.broadcast %cst_12 : f32 to vector<16x1xf32>
    %27 = arith.maximumf %25, %26 : vector<16x1xf32>
    %28 = vector.broadcast %27 : vector<16x1xf32> to vector<16x16xf32>
    %29 = arith.subf %23, %28 : vector<16x16xf32>
    %30 = math.exp %29 : vector<16x16xf32>
    %cst_13 = arith.constant dense<0.000000e+00> : vector<16xf32>
    %31 = vector.multi_reduction <add>, %30, %cst_13 [1] : vector<16x16xf32> to vector<16xf32>
    %32 = vector.shape_cast %31 : vector<16xf32> to vector<16x1xf32>
    %cst_14 = arith.constant 0.000000e+00 : f32
    %33 = vector.broadcast %cst_14 : f32 to vector<16x1xf32>
    %34 = arith.cmpf ogt, %32, %33 : vector<16x1xf32>
    %cst_15 = arith.constant 1.000000e+00 : f32
    %35 = vector.broadcast %cst_15 : f32 to vector<16x1xf32>
    %36 = arith.select %34, %32, %35 : vector<16x1xi1>, vector<16x1xf32>
    %37 = tpu.reciprocal %36 {approx = true} : vector<16x1xf32> -> vector<16x1xf32>
    %38 = arith.truncf %30 : vector<16x16xf32> to vector<16x16xbf16>
    %cst_16 = arith.constant dense<0.000000e+00> : vector<16x16xf32>
    %39 = tpu.matmul %38, %21, %cst_16 {dimension_numbers = #tpu.dot_dimension_numbers<[1], [0], [0], [1], [0, 0, 1, 1], [], []>} : vector<16x16xbf16>, vector<16x16xbf16>, vector<16x16xf32> -> vector<16x16xf32>
    %40 = vector.broadcast %37 : vector<16x1xf32> to vector<16x16xf32>
    %41 = arith.mulf %39, %40 : vector<16x16xf32>
    %42 = vector.extract_strided_slice %10 {offsets = [0, 16], sizes = [16, 16], strides = [1, 1]} : vector<16x32xf32> to vector<16x16xf32>
    %cst_17 = arith.constant 2.500000e-01 : f32
    %43 = vector.broadcast %cst_17 : f32 to vector<16x16xf32>
    %44 = arith.mulf %42, %43 : vector<16x16xf32>
    %45 = arith.truncf %44 : vector<16x16xf32> to vector<16x16xbf16>
    %46 = vector.extract_strided_slice %11 {offsets = [0, 16], sizes = [16, 16], strides = [1, 1]} : vector<16x32xf32> to vector<16x16xf32>
    %47 = arith.truncf %46 : vector<16x16xf32> to vector<16x16xbf16>
    %48 = vector.extract_strided_slice %12 {offsets = [0, 16], sizes = [16, 16], strides = [1, 1]} : vector<16x32xf32> to vector<16x16xf32>
    %49 = arith.truncf %48 : vector<16x16xf32> to vector<16x16xbf16>
    %cst_18 = arith.constant dense<0.000000e+00> : vector<16x16xf32>
    %50 = tpu.matmul %45, %47, %cst_18 {dimension_numbers = #tpu.dot_dimension_numbers<[1], [1], [0], [0], [0, 0, 1, 0], [], []>} : vector<16x16xbf16>, vector<16x16xbf16>, vector<16x16xf32> -> vector<16x16xf32>
    %51 = arith.addf %50, %4 : vector<16x16xf32>
    %cst_19 = arith.constant dense<0xFF800000> : vector<16xf32>
    %52 = vector.multi_reduction <maximumf>, %51, %cst_19 [1] : vector<16x16xf32> to vector<16xf32>
    %53 = vector.shape_cast %52 : vector<16xf32> to vector<16x1xf32>
    %cst_20 = arith.constant -1.000000e+20 : f32
    %54 = vector.broadcast %cst_20 : f32 to vector<16x1xf32>
    %55 = arith.maximumf %53, %54 : vector<16x1xf32>
    %56 = vector.broadcast %55 : vector<16x1xf32> to vector<16x16xf32>
    %57 = arith.subf %51, %56 : vector<16x16xf32>
    %58 = math.exp %57 : vector<16x16xf32>
    %cst_21 = arith.constant dense<0.000000e+00> : vector<16xf32>
    %59 = vector.multi_reduction <add>, %58, %cst_21 [1] : vector<16x16xf32> to vector<16xf32>
    %60 = vector.shape_cast %59 : vector<16xf32> to vector<16x1xf32>
    %cst_22 = arith.constant 0.000000e+00 : f32
    %61 = vector.broadcast %cst_22 : f32 to vector<16x1xf32>
    %62 = arith.cmpf ogt, %60, %61 : vector<16x1xf32>
    %cst_23 = arith.constant 1.000000e+00 : f32
    %63 = vector.broadcast %cst_23 : f32 to vector<16x1xf32>
    %64 = arith.select %62, %60, %63 : vector<16x1xi1>, vector<16x1xf32>
    %65 = tpu.reciprocal %64 {approx = true} : vector<16x1xf32> -> vector<16x1xf32>
    %66 = arith.truncf %58 : vector<16x16xf32> to vector<16x16xbf16>
    %cst_24 = arith.constant dense<0.000000e+00> : vector<16x16xf32>
    %67 = tpu.matmul %66, %49, %cst_24 {dimension_numbers = #tpu.dot_dimension_numbers<[1], [0], [0], [1], [0, 0, 1, 1], [], []>} : vector<16x16xbf16>, vector<16x16xbf16>, vector<16x16xf32> -> vector<16x16xf32>
    %68 = vector.broadcast %65 : vector<16x1xf32> to vector<16x16xf32>
    %69 = arith.mulf %67, %68 : vector<16x16xf32>
    %70 = tpu.concatenate %41, %69 in 1 : vector<16x16xf32>, vector<16x16xf32> -> vector<16x32xf32>
    %71 = arith.addf %70, %13 : vector<16x32xf32>
    %72 = arith.truncf %71 : vector<16x32xf32> to vector<16x32xbf16>
    %c0_25 = arith.constant 0 : index
    %c0_26 = arith.constant 0 : index
    %73 = vector.load %arg5[%c0_25, %c0_26] : memref<32x128xbf16, #tpu.memory_space<vmem>>, vector<32x128xbf16>
    %c0_27 = arith.constant 0 : index
    %c0_28 = arith.constant 0 : index
    %74 = vector.load %arg6[%c0_27, %c0_28] : memref<1x128xf32, #tpu.memory_space<vmem>>, vector<1x128xf32>
    %cst_29 = arith.constant dense<0.000000e+00> : vector<16x128xf32>
    %75 = tpu.matmul %72, %73, %cst_29 {dimension_numbers = #tpu.dot_dimension_numbers<[1], [0], [0], [1], [0, 0, 1, 1], [], []>} : vector<16x32xbf16>, vector<32x128xbf16>, vector<16x128xf32> -> vector<16x128xf32>
    %76 = vector.broadcast %74 : vector<1x128xf32> to vector<16x128xf32>
    %77 = arith.addf %75, %76 : vector<16x128xf32>
    %78 = vector.extract_strided_slice %77 {offsets = [0, 0], sizes = [16, 32], strides = [1, 1]} : vector<16x128xf32> to vector<16x32xf32>
    %79 = vector.extract_strided_slice %77 {offsets = [0, 32], sizes = [16, 32], strides = [1, 1]} : vector<16x128xf32> to vector<16x32xf32>
    %80 = vector.extract_strided_slice %77 {offsets = [0, 64], sizes = [16, 32], strides = [1, 1]} : vector<16x128xf32> to vector<16x32xf32>
    %81 = vector.extract_strided_slice %77 {offsets = [0, 96], sizes = [16, 32], strides = [1, 1]} : vector<16x128xf32> to vector<16x32xf32>
    %cst_30 = arith.constant 0.176776692 : f32
    %82 = vector.broadcast %cst_30 : f32 to vector<16x32xf32>
    %83 = arith.mulf %78, %82 : vector<16x32xf32>
    %84 = arith.truncf %83 : vector<16x32xf32> to vector<16x32xbf16>
    %85 = arith.truncf %79 : vector<16x32xf32> to vector<16x32xbf16>
    %86 = arith.truncf %80 : vector<16x32xf32> to vector<16x32xbf16>
    %cst_31 = arith.constant dense<0.000000e+00> : vector<16x16xf32>
    %87 = tpu.matmul %84, %85, %cst_31 {dimension_numbers = #tpu.dot_dimension_numbers<[1], [1], [0], [0], [0, 0, 1, 0], [], []>} : vector<16x32xbf16>, vector<16x32xbf16>, vector<16x16xf32> -> vector<16x16xf32>
    %88 = arith.addf %87, %4 : vector<16x16xf32>
    %cst_32 = arith.constant dense<0xFF800000> : vector<16xf32>
    %89 = vector.multi_reduction <maximumf>, %88, %cst_32 [1] : vector<16x16xf32> to vector<16xf32>
    %90 = vector.shape_cast %89 : vector<16xf32> to vector<16x1xf32>
    %cst_33 = arith.constant -1.000000e+20 : f32
    %91 = vector.broadcast %cst_33 : f32 to vector<16x1xf32>
    %92 = arith.maximumf %90, %91 : vector<16x1xf32>
    %93 = vector.broadcast %92 : vector<16x1xf32> to vector<16x16xf32>
    %94 = arith.subf %88, %93 : vector<16x16xf32>
    %95 = math.exp %94 : vector<16x16xf32>
    %cst_34 = arith.constant dense<0.000000e+00> : vector<16xf32>
    %96 = vector.multi_reduction <add>, %95, %cst_34 [1] : vector<16x16xf32> to vector<16xf32>
    %97 = vector.shape_cast %96 : vector<16xf32> to vector<16x1xf32>
    %cst_35 = arith.constant 0.000000e+00 : f32
    %98 = vector.broadcast %cst_35 : f32 to vector<16x1xf32>
    %99 = arith.cmpf ogt, %97, %98 : vector<16x1xf32>
    %cst_36 = arith.constant 1.000000e+00 : f32
    %100 = vector.broadcast %cst_36 : f32 to vector<16x1xf32>
    %101 = arith.select %99, %97, %100 : vector<16x1xi1>, vector<16x1xf32>
    %102 = tpu.reciprocal %101 {approx = true} : vector<16x1xf32> -> vector<16x1xf32>
    %103 = arith.truncf %95 : vector<16x16xf32> to vector<16x16xbf16>
    %cst_37 = arith.constant dense<0.000000e+00> : vector<16x32xf32>
    %104 = tpu.matmul %103, %86, %cst_37 {dimension_numbers = #tpu.dot_dimension_numbers<[1], [0], [0], [1], [0, 0, 1, 1], [], []>} : vector<16x16xbf16>, vector<16x32xbf16>, vector<16x32xf32> -> vector<16x32xf32>
    %105 = vector.broadcast %102 : vector<16x1xf32> to vector<16x32xf32>
    %106 = arith.mulf %104, %105 : vector<16x32xf32>
    %107 = arith.addf %106, %81 : vector<16x32xf32>
    %108 = arith.truncf %107 : vector<16x32xf32> to vector<16x32xbf16>
    %c0_38 = arith.constant 0 : index
    %c0_39 = arith.constant 0 : index
    %109 = vector.load %arg7[%c0_38, %c0_39] : memref<32x128xbf16, #tpu.memory_space<vmem>>, vector<32x128xbf16>
    %cst_40 = arith.constant dense<0.000000e+00> : vector<16x128xf32>
    %110 = tpu.matmul %108, %109, %cst_40 {dimension_numbers = #tpu.dot_dimension_numbers<[1], [0], [0], [1], [0, 0, 1, 1], [], []>} : vector<16x32xbf16>, vector<32x128xbf16>, vector<16x128xf32> -> vector<16x128xf32>
    %c0_41 = arith.constant 0 : index
    %c0_42 = arith.constant 0 : index
    %111 = vector.load %arg8[%c0_41, %c0_42] : memref<1x128xf32, #tpu.memory_space<vmem>>, vector<1x128xf32>
    %112 = vector.broadcast %111 : vector<1x128xf32> to vector<16x128xf32>
    %113 = arith.addf %110, %112 : vector<16x128xf32>
    %114 = math.tanh %113 : vector<16x128xf32>
    %115 = arith.subf %113, %114 : vector<16x128xf32>
    %116 = arith.truncf %115 : vector<16x128xf32> to vector<16x128xbf16>
    %c0_43 = arith.constant 0 : index
    %c0_44 = arith.constant 0 : index
    %117 = vector.load %arg9[%c0_43, %c0_44] : memref<128x128xbf16, #tpu.memory_space<vmem>>, vector<128x128xbf16>
    %cst_45 = arith.constant dense<0.000000e+00> : vector<16x128xf32>
    %118 = tpu.matmul %116, %117, %cst_45 {dimension_numbers = #tpu.dot_dimension_numbers<[1], [0], [0], [1], [0, 0, 1, 1], [], []>} : vector<16x128xbf16>, vector<128x128xbf16>, vector<16x128xf32> -> vector<16x128xf32>
    %c0_46 = arith.constant 0 : index
    %c0_47 = arith.constant 0 : index
    %119 = vector.load %arg10[%c0_46, %c0_47] : memref<1x128xf32, #tpu.memory_space<vmem>>, vector<1x128xf32>
    %120 = vector.broadcast %119 : vector<1x128xf32> to vector<16x128xf32>
    %121 = arith.addf %118, %120 : vector<16x128xf32>
    %122 = math.tanh %121 : vector<16x128xf32>
    %123 = arith.subf %121, %122 : vector<16x128xf32>
    %124 = arith.truncf %123 : vector<16x128xf32> to vector<16x128xbf16>
    %c0_48 = arith.constant 0 : index
    %c0_49 = arith.constant 0 : index
    %125 = vector.load %arg11[%c0_48, %c0_49] : memref<128x128xbf16, #tpu.memory_space<vmem>>, vector<128x128xbf16>
    %cst_50 = arith.constant dense<0.000000e+00> : vector<16x128xf32>
    %126 = tpu.matmul %124, %125, %cst_50 {dimension_numbers = #tpu.dot_dimension_numbers<[1], [0], [0], [1], [0, 0, 1, 1], [], []>} : vector<16x128xbf16>, vector<128x128xbf16>, vector<16x128xf32> -> vector<16x128xf32>
    %c0_51 = arith.constant 0 : index
    %c0_52 = arith.constant 0 : index
    %127 = vector.load %arg12[%c0_51, %c0_52] : memref<1x128xf32, #tpu.memory_space<vmem>>, vector<1x128xf32>
    %128 = vector.broadcast %127 : vector<1x128xf32> to vector<16x128xf32>
    %129 = arith.addf %126, %128 : vector<16x128xf32>
    %c0_53 = arith.constant 0 : index
    %c0_54 = arith.constant 0 : index
    %c0_55 = arith.constant 0 : index
    %130 = vector.load %arg13[%c0_53, %c0_54, %c0_55] : memref<1x16x128xf32, #tpu.memory_space<vmem>>, vector<1x16x128xf32>
    %131 = vector.shape_cast %130 : vector<1x16x128xf32> to vector<16x128xf32>
    %132 = vector.shape_cast %129 : vector<16x128xf32> to vector<1x16x128xf32>
    tpu.vector_store %arg13[%c0_53, %c0_54, %c0_55], %132 {strides = array<i32>} : memref<1x16x128xf32, #tpu.memory_space<vmem>>, vector<1x16x128xf32>,
    return
  }
  func.func @transform_0(%arg0: i32) -> (i32, i32, i32) {
    %c0_i32 = arith.constant 0 : i32
    %c0_i32_0 = arith.constant 0 : i32
    %c0_i32_1 = arith.constant 0 : i32
    return %arg0, %c0_i32, %c0_i32_0 : i32, i32, i32
  }
  func.func @transform_1(%arg0: i32) -> (i32, i32, i32) {
    %c0_i32 = arith.constant 0 : i32
    %c0_i32_0 = arith.constant 0 : i32
    %c0_i32_1 = arith.constant 0 : i32
    return %arg0, %c0_i32, %c0_i32_0 : i32, i32, i32
  }
  func.func @transform_2(%arg0: i32) -> (i32, i32) {
    %c0_i32 = arith.constant 0 : i32
    %c0_i32_0 = arith.constant 0 : i32
    %c0_i32_1 = arith.constant 0 : i32
    return %c0_i32, %c0_i32_0 : i32, i32
  }
  func.func @transform_3(%arg0: i32) -> (i32, i32) {
    %c0_i32 = arith.constant 0 : i32
    %c0_i32_0 = arith.constant 0 : i32
    %c0_i32_1 = arith.constant 0 : i32
    return %c0_i32, %c0_i32_0 : i32, i32
  }
  func.func @transform_4(%arg0: i32) -> (i32, i32) {
    %c0_i32 = arith.constant 0 : i32
    %c0_i32_0 = arith.constant 0 : i32
    %c0_i32_1 = arith.constant 0 : i32
    return %c0_i32, %c0_i32_0 : i32, i32
  }
  func.func @transform_5(%arg0: i32) -> (i32, i32) {
    %c0_i32 = arith.constant 0 : i32
    %c0_i32_0 = arith.constant 0 : i32
    %c0_i32_1 = arith.constant 0 : i32
    return %c0_i32, %c0_i32_0 : i32, i32
  }
  func.func @transform_6(%arg0: i32) -> (i32, i32) {
    %c0_i32 = arith.constant 0 : i32
    %c0_i32_0 = arith.constant 0 : i32
    %c0_i32_1 = arith.constant 0 : i32
    return %c0_i32, %c0_i32_0 : i32, i32
  }
  func.func @transform_7(%arg0: i32) -> (i32, i32) {
    %c0_i32 = arith.constant 0 : i32
    %c0_i32_0 = arith.constant 0 : i32
    %c0_i32_1 = arith.constant 0 : i32
    return %c0_i32, %c0_i32_0 : i32, i32
  }
  func.func @transform_8(%arg0: i32) -> (i32, i32) {
    %c0_i32 = arith.constant 0 : i32
    %c0_i32_0 = arith.constant 0 : i32
    %c0_i32_1 = arith.constant 0 : i32
    return %c0_i32, %c0_i32_0 : i32, i32
  }
  func.func @transform_9(%arg0: i32) -> (i32, i32) {
    %c0_i32 = arith.constant 0 : i32
    %c0_i32_0 = arith.constant 0 : i32
    %c0_i32_1 = arith.constant 0 : i32
    return %c0_i32, %c0_i32_0 : i32, i32
  }
  func.func @transform_10(%arg0: i32) -> (i32, i32) {
    %c0_i32 = arith.constant 0 : i32
    %c0_i32_0 = arith.constant 0 : i32
    %c0_i32_1 = arith.constant 0 : i32
    return %c0_i32, %c0_i32_0 : i32, i32
  }
  func.func @transform_11(%arg0: i32) -> (i32, i32) {
    %c0_i32 = arith.constant 0 : i32
    %c0_i32_0 = arith.constant 0 : i32
    %c0_i32_1 = arith.constant 0 : i32
    return %c0_i32, %c0_i32_0 : i32, i32
  }
  func.func @transform_12(%arg0: i32) -> (i32, i32, i32) {
    %c0_i32 = arith.constant 0 : i32
    %c0_i32_0 = arith.constant 0 : i32
    %c0_i32_1 = arith.constant 0 : i32
    return %arg0, %c0_i32, %c0_i32_0 : i32, i32, i32
  }
}

</mosaic_0001>

<llo_original>
// kernel: tpu_custom_call.1
$region0: #{tpu_custom_call.1}
  #allocation0 [shape = 'u32[]', space=smem, size = 0x4, offset = 0x4, fixed_abs, tag = 'smem constant byte address 0x4 - core index']
  #allocation1 [shape = 'u32[144,128]{1,0:T(1,128)}', space=vmem, size = 0x12000, scoped, tag = 'internal scratch']
  %s0 = inlined_call_operand.vmem [shape: bf16[2,16,8], index: 0, kind: input, shape index: {}]
  %s1 = inlined_call_operand.vmem [shape: bf16[2,16,16], index: 1, kind: input, shape index: {}]
  %s2 = inlined_call_operand.hbm [shape: bf16[8,128], index: 2, kind: input, shape index: {}]
  %s3 = inlined_call_operand.vmem [shape: f32[1,128], index: 3, kind: input, shape index: {}]
  %s4 = inlined_call_operand.vmem [shape: bf16[32,128], index: 4, kind: input, shape index: {}]
  %s5 = inlined_call_operand.vmem [shape: f32[1,128], index: 5, kind: input, shape index: {}]
  %s6 = inlined_call_operand.hbm [shape: bf16[32,128], index: 6, kind: input, shape index: {}]
  %s7 = inlined_call_operand.vmem [shape: f32[1,128], index: 7, kind: input, shape index: {}]
  %s8 = inlined_call_operand.hbm [shape: bf16[128,128], index: 8, kind: input, shape index: {}]
  %s9 = inlined_call_operand.vmem [shape: f32[1,128], index: 9, kind: input, shape index: {}]
  %s10 = inlined_call_operand.hbm [shape: bf16[128,128], index: 10, kind: input, shape index: {}]
  %s11 = inlined_call_operand.vmem [shape: f32[1,128], index: 11, kind: input, shape index: {}]
  %s12 = inlined_call_operand.hbm [shape: f32[2,16,128], index: 12, kind: output, shape index: {}]
  %s13 = sld [smem:[#allocation0]]
  $region97: #{tpu_custom_call.1} parent=0
    _
  %s15 = ssub.s32 1, %s13
  %s16 = scalar_select 0, %s15, %s13
  $region1: #{tpu_custom_call.1} parent=0
    #allocation2 [shape = 'u8[2048]{0}', space=vmem, size = 0x800, scoped, tag = 'input window, operand 2, single buffered']
    #allocation3 [shape = 's32[2]{0}', space=sflag, size = 0x8, scoped, tag = 'scoped memory for tpu_custom_call.1']
    #allocation4 [shape = 's32[2]{0}', space=sflag, size = 0x8, scoped, tag = 'scoped memory for tpu_custom_call.1']
    #allocation5 [shape = 'u8[8192]{0}', space=vmem, size = 0x2000, scoped, tag = 'input window, operand 6, single buffered']
    #allocation6 [shape = 's32[1]{0}', space=sflag, size = 0x4, scoped, tag = 'scoped memory for tpu_custom_call.1']
    #allocation7 [shape = 'u8[32768]{0}', space=vmem, size = 0x8000, scoped, tag = 'input window, operand 8, single buffered']
    #allocation8 [shape = 'u8[32768]{0}', space=vmem, size = 0x8000, scoped, tag = 'input window, operand 10, single buffered']
    #allocation9 [shape = 's32[1]{0}', space=sflag, size = 0x4, scoped, tag = 'scoped memory for tpu_custom_call.1']
    #allocation10 [shape = 'u8[16384]{0}', space=vmem, size = 0x4000, scoped, tag = 'output window, operand 0']
    %17 = vsyncpa [#allocation3], 0
    %18 = vsyncpa [#allocation6], 0
    %19 = vsyncpa [#allocation9], 0
    %20 = vsyncpa [#allocation4], 0
    %s21 = scalar_lea.sflag [#allocation4], 1
    %22 = vsyncpa %s21, 0
    loop: start=0, step=1, limit=4
    $region2: #{tpu_custom_call.1} parent=1 // loop_pre_header
      _
    $region3: #{tpu_custom_call.1} parent=1 // loop_header
      %s24 = sphi 0, %s28
      %p25 = scmp.ge.s32.totalorder %s24, 4
      %s34 = sphi 0, %s36
      %s37 = sphi 0, %s34
      %s38 = sphi 0, %s37
      %s54 = sphi 0, %s38
      %s60 = sphi 0, %s62
      %s63 = sphi 0, %s60
      %s64 = sphi 0, %s63
      %s80 = sphi 0, %s64
      %s84 = sphi 0, %s84
      %s86 = sphi 0, %s84
      %s87 = sphi 0, %s86
      %s101 = sphi 0, %s87
      %s105 = sphi 0, %s105
      %s107 = sphi 0, %s105
      %s108 = sphi 0, %s107
      %s122 = sphi 0, %s108
      %s126 = sphi 0, %s126
      %s128 = sphi 0, %s126
      %s129 = sphi 0, %s128
      %s143 = sphi 0, %s129
      %s147 = sphi 0, %s147
      %s149 = sphi 0, %s147
      %s150 = sphi 0, %s149
      %s164 = sphi 0, %s150
      %s168 = sphi 0, %s168
      %s170 = sphi 0, %s168
      %s171 = sphi 0, %s170
      %s185 = sphi 0, %s171
      %s189 = sphi 0, %s189
      %s191 = sphi 0, %s189
      %s192 = sphi 0, %s191
      %s206 = sphi 0, %s192
      %s210 = sphi 0, %s210
      %s212 = sphi 0, %s210
      %s213 = sphi 0, %s212
      %s227 = sphi 0, %s213
      %s231 = sphi 0, %s231
      %s233 = sphi 0, %s231
      %s234 = sphi 0, %s233
      %s248 = sphi 0, %s234
      %s252 = sphi 0, %s252
      %s254 = sphi 0, %s252
      %s255 = sphi 0, %s254
      %s269 = sphi 0, %s255
      %s273 = sphi 0, %s273
      %s275 = sphi 0, %s273
      %s276 = sphi 0, %s275
      %s290 = sphi 0, %s276
      %s296 = sphi 0, %s298
      %s299 = sphi 0, %s296
      %s300 = sphi 0, %s299
      %s316 = sphi 0, %s300
    $region4: #{tpu_custom_call.1} parent=1 // loop_header_branch
      %27 = sbr.rel (%p25) target = $region8
    $region5: #{tpu_custom_call.1} parent=1 // loop_body
      %s29 = ssub.s32 %s24, 1
      %s30 = ssub.s32 %s24, 2
      %s31 = sadd.s32 %s24, 1
      %s32 = ssub.s32 %s24, %s31
      %p33 = scmp.eq.s32.totalorder %s32, 0
      %s35 = sadd.s32 %s34, 1
      %s36 = scalar_select %p33, %s34, %s35
      %p39 = pneg %p33
      %p40 = scmp.eq.s32.totalorder %s24, 1
      %p41 = por %p39, %p40
      %p42 = scmp.ne.s32.totalorder %s34, %s37
      %p43 = scmp.eq.s32.totalorder %s24, 0
      %p44 = por %p42, %p43
      %p45 = scmp.ne.s32.totalorder %s34, %s37
      %p46 = scmp.eq.s32.totalorder %s29, 1
      %p47 = por %p45, %p46
      %p48 = scmp.ne.s32.totalorder %s37, %s38
      %p49 = scmp.eq.s32.totalorder %s29, 0
      %p50 = por %p48, %p49
      %p51 = scmp.ne.s32.totalorder %s37, %s38
      %p52 = scmp.eq.s32.totalorder %s30, 1
      %p53 = por %p51, %p52
      %p55 = scmp.ne.s32.totalorder %s38, %s54
      %p56 = scmp.eq.s32.totalorder %s30, 0
      %p57 = por %p55, %p56
      %s58 = ssub.s32 %s24, %s31
      %p59 = scmp.eq.s32.totalorder %s58, 0
      %s61 = sadd.s32 %s60, 1
      %s62 = scalar_select %p59, %s60, %s61
      %p65 = pneg %p59
      %p66 = scmp.eq.s32.totalorder %s24, 1
      %p67 = por %p65, %p66
      %p68 = scmp.ne.s32.totalorder %s60, %s63
      %p69 = scmp.eq.s32.totalorder %s24, 0
      %p70 = por %p68, %p69
      %p71 = scmp.ne.s32.totalorder %s60, %s63
      %p72 = scmp.eq.s32.totalorder %s29, 1
      %p73 = por %p71, %p72
      %p74 = scmp.ne.s32.totalorder %s63, %s64
      %p75 = scmp.eq.s32.totalorder %s29, 0
      %p76 = por %p74, %p75
      %p77 = scmp.ne.s32.totalorder %s63, %s64
      %p78 = scmp.eq.s32.totalorder %s30, 1
      %p79 = por %p77, %p78
      %p81 = scmp.ne.s32.totalorder %s64, %s80
      %p82 = scmp.eq.s32.totalorder %s30, 0
      %p83 = por %p81, %p82
      %s85 = sadd.s32 %s84, 1
      %p88 = scmp.eq.s32.totalorder %s24, 1
      %p89 = scmp.ne.s32.totalorder %s84, %s86
      %p90 = scmp.eq.s32.totalorder %s24, 0
      %p91 = por %p89, %p90
      %p92 = scmp.ne.s32.totalorder %s84, %s86
      %p93 = scmp.eq.s32.totalorder %s29, 1
      %p94 = por %p92, %p93
      %p95 = scmp.ne.s32.totalorder %s86, %s87
      %p96 = scmp.eq.s32.totalorder %s29, 0
      %p97 = por %p95, %p96
      %p98 = scmp.ne.s32.totalorder %s86, %s87
      %p99 = scmp.eq.s32.totalorder %s30, 1
      %p100 = por %p98, %p99
      %p102 = scmp.ne.s32.totalorder %s87, %s101
      %p103 = scmp.eq.s32.totalorder %s30, 0
      %p104 = por %p102, %p103
      %s106 = sadd.s32 %s105, 1
      %p109 = scmp.eq.s32.totalorder %s24, 1
      %p110 = scmp.ne.s32.totalorder %s105, %s107
      %p111 = scmp.eq.s32.totalorder %s24, 0
      %p112 = por %p110, %p111
      %p113 = scmp.ne.s32.totalorder %s105, %s107
      %p114 = scmp.eq.s32.totalorder %s29, 1
      %p115 = por %p113, %p114
      %p116 = scmp.ne.s32.totalorder %s107, %s108
      %p117 = scmp.eq.s32.totalorder %s29, 0
      %p118 = por %p116, %p117
      %p119 = scmp.ne.s32.totalorder %s107, %s108
      %p120 = scmp.eq.s32.totalorder %s30, 1
      %p121 = por %p119, %p120
      %p123 = scmp.ne.s32.totalorder %s108, %s122
      %p124 = scmp.eq.s32.totalorder %s30, 0
      %p125 = por %p123, %p124
      %s127 = sadd.s32 %s126, 1
      %p130 = scmp.eq.s32.totalorder %s24, 1
      %p131 = scmp.ne.s32.totalorder %s126, %s128
      %p132 = scmp.eq.s32.totalorder %s24, 0
      %p133 = por %p131, %p132
      %p134 = scmp.ne.s32.totalorder %s126, %s128
      %p135 = scmp.eq.s32.totalorder %s29, 1
      %p136 = por %p134, %p135
      %p137 = scmp.ne.s32.totalorder %s128, %s129
      %p138 = scmp.eq.s32.totalorder %s29, 0
      %p139 = por %p137, %p138
      %p140 = scmp.ne.s32.totalorder %s128, %s129
      %p141 = scmp.eq.s32.totalorder %s30, 1
      %p142 = por %p140, %p141
      %p144 = scmp.ne.s32.totalorder %s129, %s143
      %p145 = scmp.eq.s32.totalorder %s30, 0
      %p146 = por %p144, %p145
      %s148 = sadd.s32 %s147, 1
      %p151 = scmp.eq.s32.totalorder %s24, 1
      %p152 = scmp.ne.s32.totalorder %s147, %s149
      %p153 = scmp.eq.s32.totalorder %s24, 0
      %p154 = por %p152, %p153
      %p155 = scmp.ne.s32.totalorder %s147, %s149
      %p156 = scmp.eq.s32.totalorder %s29, 1
      %p157 = por %p155, %p156
      %p158 = scmp.ne.s32.totalorder %s149, %s150
      %p159 = scmp.eq.s32.totalorder %s29, 0
      %p160 = por %p158, %p159
      %p161 = scmp.ne.s32.totalorder %s149, %s150
      %p162 = scmp.eq.s32.totalorder %s30, 1
      %p163 = por %p161, %p162
      %p165 = scmp.ne.s32.totalorder %s150, %s164
      %p166 = scmp.eq.s32.totalorder %s30, 0
      %p167 = por %p165, %p166
      %s169 = sadd.s32 %s168, 1
      %p172 = scmp.eq.s32.totalorder %s24, 1
      %p173 = scmp.ne.s32.totalorder %s168, %s170
      %p174 = scmp.eq.s32.totalorder %s24, 0
      %p175 = por %p173, %p174
      %p176 = scmp.ne.s32.totalorder %s168, %s170
      %p177 = scmp.eq.s32.totalorder %s29, 1
      %p178 = por %p176, %p177
      %p179 = scmp.ne.s32.totalorder %s170, %s171
      %p180 = scmp.eq.s32.totalorder %s29, 0
      %p181 = por %p179, %p180
      %p182 = scmp.ne.s32.totalorder %s170, %s171
      %p183 = scmp.eq.s32.totalorder %s30, 1
      %p184 = por %p182, %p183
      %p186 = scmp.ne.s32.totalorder %s171, %s185
      %p187 = scmp.eq.s32.totalorder %s30, 0
      %p188 = por %p186, %p187
      %s190 = sadd.s32 %s189, 1
      %p193 = scmp.eq.s32.totalorder %s24, 1
      %p194 = scmp.ne.s32.totalorder %s189, %s191
      %p195 = scmp.eq.s32.totalorder %s24, 0
      %p196 = por %p194, %p195
      %p197 = scmp.ne.s32.totalorder %s189, %s191
      %p198 = scmp.eq.s32.totalorder %s29, 1
      %p199 = por %p197, %p198
      %p200 = scmp.ne.s32.totalorder %s191, %s192
      %p201 = scmp.eq.s32.totalorder %s29, 0
      %p202 = por %p200, %p201
      %p203 = scmp.ne.s32.totalorder %s191, %s192
      %p204 = scmp.eq.s32.totalorder %s30, 1
      %p205 = por %p203, %p204
      %p207 = scmp.ne.s32.totalorder %s192, %s206
      %p208 = scmp.eq.s32.totalorder %s30, 0
      %p209 = por %p207, %p208
      %s211 = sadd.s32 %s210, 1
      %p214 = scmp.eq.s32.totalorder %s24, 1
      %p215 = scmp.ne.s32.totalorder %s210, %s212
      %p216 = scmp.eq.s32.totalorder %s24, 0
      %p217 = por %p215, %p216
      %p218 = scmp.ne.s32.totalorder %s210, %s212
      %p219 = scmp.eq.s32.totalorder %s29, 1
      %p220 = por %p218, %p219
      %p221 = scmp.ne.s32.totalorder %s212, %s213
      %p222 = scmp.eq.s32.totalorder %s29, 0
      %p223 = por %p221, %p222
      %p224 = scmp.ne.s32.totalorder %s212, %s213
      %p225 = scmp.eq.s32.totalorder %s30, 1
      %p226 = por %p224, %p225
      %p228 = scmp.ne.s32.totalorder %s213, %s227
      %p229 = scmp.eq.s32.totalorder %s30, 0
      %p230 = por %p228, %p229
      %s232 = sadd.s32 %s231, 1
      %p235 = scmp.eq.s32.totalorder %s24, 1
      %p236 = scmp.ne.s32.totalorder %s231, %s233
      %p237 = scmp.eq.s32.totalorder %s24, 0
      %p238 = por %p236, %p237
      %p239 = scmp.ne.s32.totalorder %s231, %s233
      %p240 = scmp.eq.s32.totalorder %s29, 1
      %p241 = por %p239, %p240
      %p242 = scmp.ne.s32.totalorder %s233, %s234
      %p243 = scmp.eq.s32.totalorder %s29, 0
      %p244 = por %p242, %p243
      %p245 = scmp.ne.s32.totalorder %s233, %s234
      %p246 = scmp.eq.s32.totalorder %s30, 1
      %p247 = por %p245, %p246
      %p249 = scmp.ne.s32.totalorder %s234, %s248
      %p250 = scmp.eq.s32.totalorder %s30, 0
      %p251 = por %p249, %p250
      %s253 = sadd.s32 %s252, 1
      %p256 = scmp.eq.s32.totalorder %s24, 1
      %p257 = scmp.ne.s32.totalorder %s252, %s254
      %p258 = scmp.eq.s32.totalorder %s24, 0
      %p259 = por %p257, %p258
      %p260 = scmp.ne.s32.totalorder %s252, %s254
      %p261 = scmp.eq.s32.totalorder %s29, 1
      %p262 = por %p260, %p261
      %p263 = scmp.ne.s32.totalorder %s254, %s255
      %p264 = scmp.eq.s32.totalorder %s29, 0
      %p265 = por %p263, %p264
      %p266 = scmp.ne.s32.totalorder %s254, %s255
      %p267 = scmp.eq.s32.totalorder %s30, 1
      %p268 = por %p266, %p267
      %p270 = scmp.ne.s32.totalorder %s255, %s269
      %p271 = scmp.eq.s32.totalorder %s30, 0
      %p272 = por %p270, %p271
      %s274 = sadd.s32 %s273, 1
      %p277 = scmp.eq.s32.totalorder %s24, 1
      %p278 = scmp.ne.s32.totalorder %s273, %s275
      %p279 = scmp.eq.s32.totalorder %s24, 0
      %p280 = por %p278, %p279
      %p281 = scmp.ne.s32.totalorder %s273, %s275
      %p282 = scmp.eq.s32.totalorder %s29, 1
      %p283 = por %p281, %p282
      %p284 = scmp.ne.s32.totalorder %s275, %s276
      %p285 = scmp.eq.s32.totalorder %s29, 0
      %p286 = por %p284, %p285
      %p287 = scmp.ne.s32.totalorder %s275, %s276
      %p288 = scmp.eq.s32.totalorder %s30, 1
      %p289 = por %p287, %p288
      %p291 = scmp.ne.s32.totalorder %s276, %s290
      %p292 = scmp.eq.s32.totalorder %s30, 0
      %p293 = por %p291, %p292
      %s294 = ssub.s32 %s24, %s31
      %p295 = scmp.eq.s32.totalorder %s294, 0
      %s297 = sadd.s32 %s296, 1
      %s298 = scalar_select %p295, %s296, %s297
      %p301 = pneg %p295
      %p302 = scmp.eq.s32.totalorder %s24, 1
      %p303 = por %p301, %p302
      %p304 = scmp.ne.s32.totalorder %s296, %s299
      %p305 = scmp.eq.s32.totalorder %s24, 0
      %p306 = por %p304, %p305
      %p307 = scmp.ne.s32.totalorder %s296, %s299
      %p308 = scmp.eq.s32.totalorder %s29, 1
      %p309 = por %p307, %p308
      %p310 = scmp.ne.s32.totalorder %s299, %s300
      %p311 = scmp.eq.s32.totalorder %s29, 0
      %p312 = por %p310, %p311
      %p313 = scmp.ne.s32.totalorder %s299, %s300
      %p314 = scmp.eq.s32.totalorder %s30, 1
      %p315 = por %p313, %p314
      %p317 = scmp.ne.s32.totalorder %s300, %s316
      %p318 = scmp.eq.s32.totalorder %s30, 0
      %p319 = por %p317, %p318
      %p320 = scmp.le.s32.totalorder 1, %s24
      %p321 = scmp.lt.s32.totalorder %s24, 3
      %p322 = pnand %p320, %p321
      %p323 = pneg %p322
      // Predicated region
      $region9: #{tpu_custom_call.1} parent=5 // pred_check
        _
      $region10: #{tpu_custom_call.1} parent=5 // pred_check_branch
        %325 = sbr.rel (%p322) target = $region12
      $region11: #{tpu_custom_call.1} parent=5 // pred_region
        %s326 = ssub.s32 %s24, 1
        // Predicated region
        $region13: #{tpu_custom_call.1} parent=11 // pred_check
          %p327 = pneg %p97
        $region14: #{tpu_custom_call.1} parent=11 // pred_check_branch
          %329 = sbr.rel (%p327) target = $region16
        $region15: #{tpu_custom_call.1} parent=11 // pred_region
          %s331 = ssub.s32 64, 64
          %332 = vsyncadd [#allocation3], %s331
          %s334 = sshll.u32 [#allocation2], 4
          %s335 = int_to_ptr.vmem [resolvable:$true] %s334
          %337 = dma.hbm_to_vmem [thread:$0]  %s2, 64, %s335, [#allocation3]
        $region16: #{tpu_custom_call.1} parent=11 // pred_fallthru
          _
        // Predicated region
        $region17: #{tpu_custom_call.1} parent=11 // pred_check
          %p338 = pneg %p118
        $region18: #{tpu_custom_call.1} parent=11 // pred_check_branch
          %340 = sbr.rel (%p338) target = $region20
        $region19: #{tpu_custom_call.1} parent=11 // pred_region
          _
        $region20: #{tpu_custom_call.1} parent=11 // pred_fallthru
          _
        // Predicated region
        $region21: #{tpu_custom_call.1} parent=11 // pred_check
          %p341 = pneg %p139
        $region22: #{tpu_custom_call.1} parent=11 // pred_check_branch
          %343 = sbr.rel (%p341) target = $region24
        $region23: #{tpu_custom_call.1} parent=11 // pred_region
          _
        $region24: #{tpu_custom_call.1} parent=11 // pred_fallthru
          _
        // Predicated region
        $region25: #{tpu_custom_call.1} parent=11 // pred_check
          %p344 = pneg %p160
        $region26: #{tpu_custom_call.1} parent=11 // pred_check_branch
          %346 = sbr.rel (%p344) target = $region28
        $region27: #{tpu_custom_call.1} parent=11 // pred_region
          _
        $region28: #{tpu_custom_call.1} parent=11 // pred_fallthru
          _
        // Predicated region
        $region29: #{tpu_custom_call.1} parent=11 // pred_check
          %p347 = pneg %p181
        $region30: #{tpu_custom_call.1} parent=11 // pred_check_branch
          %349 = sbr.rel (%p347) target = $region32
        $region31: #{tpu_custom_call.1} parent=11 // pred_region
          %s351 = ssub.s32 256, 256
          %352 = vsyncadd [#allocation6], %s351
          %s353 = sshll.u32 [#allocation5], 4
          %s354 = int_to_ptr.vmem [resolvable:$true] %s353
          %359 = dma.hbm_to_vmem [thread:$0]  %s6, 256, %s354, [#allocation6], 64, 64, 4
        $region32: #{tpu_custom_call.1} parent=11 // pred_fallthru
          _
        // Predicated region
        $region33: #{tpu_custom_call.1} parent=11 // pred_check
          %p360 = pneg %p202
        $region34: #{tpu_custom_call.1} parent=11 // pred_check_branch
          %362 = sbr.rel (%p360) target = $region36
        $region35: #{tpu_custom_call.1} parent=11 // pred_region
          _
        $region36: #{tpu_custom_call.1} parent=11 // pred_fallthru
          _
        // Predicated region
        $region37: #{tpu_custom_call.1} parent=11 // pred_check
          %p363 = pneg %p223
        $region38: #{tpu_custom_call.1} parent=11 // pred_check_branch
          %365 = sbr.rel (%p363) target = $region40
        $region39: #{tpu_custom_call.1} parent=11 // pred_region
          %s367 = ssub.s32 1024, 1024
          %368 = vsyncadd [#allocation6], %s367
          %s369 = sshll.u32 [#allocation7], 4
          %s370 = int_to_ptr.vmem [resolvable:$true] %s369
          %375 = dma.hbm_to_vmem [thread:$0]  %s8, 1024, %s370, [#allocation6], 64, 64, 4
        $region40: #{tpu_custom_call.1} parent=11 // pred_fallthru
          _
        // Predicated region
        $region41: #{tpu_custom_call.1} parent=11 // pred_check
          %p376 = pneg %p244
        $region42: #{tpu_custom_call.1} parent=11 // pred_check_branch
          %378 = sbr.rel (%p376) target = $region44
        $region43: #{tpu_custom_call.1} parent=11 // pred_region
          _
        $region44: #{tpu_custom_call.1} parent=11 // pred_fallthru
          _
        // Predicated region
        $region45: #{tpu_custom_call.1} parent=11 // pred_check
          %p379 = pneg %p265
        $region46: #{tpu_custom_call.1} parent=11 // pred_check_branch
          %381 = sbr.rel (%p379) target = $region48
        $region47: #{tpu_custom_call.1} parent=11 // pred_region
          %s383 = ssub.s32 1024, 1024
          %384 = vsyncadd [#allocation9], %s383
          %s385 = sshll.u32 [#allocation8], 4
          %s386 = int_to_ptr.vmem [resolvable:$true] %s385
          %391 = dma.hbm_to_vmem [thread:$0]  %s10, 1024, %s386, [#allocation9], 64, 64, 4
        $region48: #{tpu_custom_call.1} parent=11 // pred_fallthru
          _
        // Predicated region
        $region49: #{tpu_custom_call.1} parent=11 // pred_check
          %p392 = pneg %p286
        $region50: #{tpu_custom_call.1} parent=11 // pred_check_branch
          %394 = sbr.rel (%p392) target = $region52
        $region51: #{tpu_custom_call.1} parent=11 // pred_region
          _
        $region52: #{tpu_custom_call.1} parent=11 // pred_fallthru
          _
      $region12: #{tpu_custom_call.1} parent=5 // pred_fallthru
        _
      %p395 = scmp.lt.s32.totalorder %s24, 2
      // Predicated region
      $region53: #{tpu_custom_call.1} parent=5 // pred_check
        %p396 = pneg %p395
      $region54: #{tpu_custom_call.1} parent=5 // pred_check_branch
        %398 = sbr.rel (%p396) target = $region56
      $region55: #{tpu_custom_call.1} parent=5 // pred_region
        // Predicated region
        $region57: #{tpu_custom_call.1} parent=55 // pred_check
          %p399 = pneg %p44
        $region58: #{tpu_custom_call.1} parent=55 // pred_check_branch
          %401 = sbr.rel (%p399) target = $region60
        $region59: #{tpu_custom_call.1} parent=55 // pred_region
          %p402 = scmp.lt.s32.totalorder %s24, 1
          %s403 = scalar_select %p402, %s24, 1
          %s404 = smul.addr %s403, 2
          %s405 = smul.addr %s404, 4
          %s406 = scalar_lea.vmem %s0, %s405
        $region60: #{tpu_custom_call.1} parent=55 // pred_fallthru
          _
        // Predicated region
        $region61: #{tpu_custom_call.1} parent=55 // pred_check
          %p407 = pneg %p70
        $region62: #{tpu_custom_call.1} parent=55 // pred_check_branch
          %409 = sbr.rel (%p407) target = $region64
        $region63: #{tpu_custom_call.1} parent=55 // pred_region
          %p410 = scmp.lt.s32.totalorder %s24, 1
          %s411 = scalar_select %p410, %s24, 1
          %s412 = smul.addr %s411, 2
          %s413 = smul.addr %s412, 4
          %s414 = scalar_lea.vmem %s1, %s413
        $region64: #{tpu_custom_call.1} parent=55 // pred_fallthru
          _
      $region56: #{tpu_custom_call.1} parent=5 // pred_fallthru
        _
      %p415 = scmp.le.s32.totalorder 1, %s24
      %p416 = scmp.lt.s32.totalorder %s24, 3
      %p417 = pnand %p415, %p416
      %p418 = pneg %p417
      // Predicated region
      $region65: #{tpu_custom_call.1} parent=5 // pred_check
        _
      $region66: #{tpu_custom_call.1} parent=5 // pred_check_branch
        %420 = sbr.rel (%p417) target = $region68
      $region67: #{tpu_custom_call.1} parent=5 // pred_region
        %s421 = ssub.s32 %s24, 1
        // Predicated region
        $region69: #{tpu_custom_call.1} parent=67 // pred_check
          %p422 = pneg %p97
        $region70: #{tpu_custom_call.1} parent=67 // pred_check_branch
          %424 = sbr.rel (%p422) target = $region72
        $region71: #{tpu_custom_call.1} parent=67 // pred_region
          %425 = dma.done [#allocation3], 64
        $region72: #{tpu_custom_call.1} parent=67 // pred_fallthru
          _
        // Predicated region
        $region73: #{tpu_custom_call.1} parent=67 // pred_check
          %p426 = pneg %p181
        $region74: #{tpu_custom_call.1} parent=67 // pred_check_branch
          %428 = sbr.rel (%p426) target = $region76
        $region75: #{tpu_custom_call.1} parent=67 // pred_region
          %429 = dma.done [#allocation6], 256
        $region76: #{tpu_custom_call.1} parent=67 // pred_fallthru
          _
        // Predicated region
        $region77: #{tpu_custom_call.1} parent=67 // pred_check
          %p430 = pneg %p223
        $region78: #{tpu_custom_call.1} parent=67 // pred_check_branch
          %432 = sbr.rel (%p430) target = $region80
        $region79: #{tpu_custom_call.1} parent=67 // pred_region
          %433 = dma.done [#allocation6], 1024
        $region80: #{tpu_custom_call.1} parent=67 // pred_fallthru
          _
        // Predicated region
        $region81: #{tpu_custom_call.1} parent=67 // pred_check
          %p434 = pneg %p265
        $region82: #{tpu_custom_call.1} parent=67 // pred_check_branch
          %436 = sbr.rel (%p434) target = $region84
        $region83: #{tpu_custom_call.1} parent=67 // pred_region
          %437 = dma.done [#allocation9], 1024
        $region84: #{tpu_custom_call.1} parent=67 // pred_fallthru
          _
        %p438 = scmp.lt.s32.totalorder %s29, 1
        %s439 = scalar_select %p438, %s29, 1
        %s440 = smul.addr %s439, 2
        %s441 = smul.addr %s440, 4
        %s442 = scalar_lea.vmem %s0, %s441
        %p443 = pneg %p50
        %p444 = pneg %p47
        %p445 = scmp.lt.s32.totalorder %s29, 1
        %s446 = scalar_select %p445, %s29, 1
        %s447 = smul.addr %s446, 2
        %s448 = smul.addr %s447, 4
        %s449 = scalar_lea.vmem %s1, %s448
        %p450 = pneg %p76
        %p451 = pneg %p73
        %p452 = pneg %p97
        %p453 = pneg %p94
        %p454 = pneg %p118
        %p455 = pneg %p115
        %p456 = pneg %p139
        %p457 = pneg %p136
        %p458 = pneg %p160
        %p459 = pneg %p157
        %p460 = pneg %p181
        %p461 = pneg %p178
        %p462 = pneg %p202
        %p463 = pneg %p199
        %p464 = pneg %p223
        %p465 = pneg %p220
        %p466 = pneg %p244
        %p467 = pneg %p241
        %p468 = pneg %p265
        %p469 = pneg %p262
        %p470 = pneg %p286
        %p471 = pneg %p283
        %p472 = pneg %p312
        %p473 = pneg %p309
        %s474 = sand.u32 %s299, 1
        %s475 = scalar_lea.sflag [#allocation4], %s474
        %s476 = sand.u32 %s299, 1
        %s477 = smul.addr %s476, 16
        %s478 = scalar_lea.vmem [#allocation10], %s477
        %p479 = scmp.lt.s32.totalorder %s29, 1
        %s480 = scalar_select %p479, %s29, 1
        %s481 = smul.addr %s480, 2
        %s482 = smul.addr %s481, 4
        %s483 = scalar_lea.vmem %s0, %s482
        %p484 = scmp.lt.s32.totalorder %s29, 1
        %s485 = scalar_select %p484, %s29, 1
        %s486 = smul.addr %s485, 2
        %s487 = smul.addr %s486, 4
        %s488 = scalar_lea.vmem %s1, %s487
        %v490 = vld [vmem:[%s483] sm:$0xf]
        %v491 = vld [vmem:[%s483 + $0x4] sm:$0xf]
        %v492 = vld [vmem:[%s488] sm:$0xf]
        %v493 = vld [vmem:[%s488 + $0x4] sm:$0xf]
        %v494 = vunpack.c.l.bf16 %v492
        %v495 = vunpack.c.l.bf16 %v493
        %v496 = vld [vmem:[#allocation2] sm:$0xf]
        %v497 = vld [vmem:[%s3] sm:$0x1]
        %v499 = vlaneseq
        %v500 = vshrl.u32 %v499, 7
        %v501 = vsub.s32 0, %v500
        %v502 = vrot.slane %v497, %v501
        %v506 = vunpack.c.l.b16 %v490
        %v507 = vunpack.c.l.b16 %v491
        %v508 = vpack.c.b16 %v507, %v506
        %vm509 = vcmask 64512
        %v511 = vsel %vm509, %v508, 0
        %vm513 = vcmask 1043456
        %v515 = vsel %vm513, %v496, 0
        %517 = vmatprep.subr.bf16.mxu0 0
        %518 = vmatpush1.bf16.msra.mxu0 %v515
        %519 = vmatprep.subr.bf16.mxu0 0
        %520 = vmatpush1.bf16.msra.mxu0 0
        %521 = vmatprep.subr.bf16.mxu0 0
        %522 = vmatpush1.bf16.msra.mxu0 0
        %523 = vmatprep.subr.bf16.mxu0 0
        %524 = vmatpush1.bf16.msra.mxu0 0
        %525 = vmatprep.subr.bf16.mxu0 0
        %526 = vmatpush1.bf16.msra.mxu0 0
        %527 = vmatprep.subr.bf16.mxu0 0
        %528 = vmatpush1.bf16.msra.mxu0 0
        %529 = vmatprep.subr.bf16.mxu0 0
        %530 = vmatpush1.bf16.msra.mxu0 0
        %531 = vmatprep.subr.bf16.mxu0 0
        %532 = vmatpush1.bf16.msra.mxu0 0
        %533 = vmatprep.subr.bf16.mxu0 0
        %534 = vmatpush1.bf16.msra.mxu0 0
        %535 = vmatprep.subr.bf16.mxu0 0
        %536 = vmatpush1.bf16.msra.mxu0 0
        %537 = vmatprep.subr.bf16.mxu0 0
        %538 = vmatpush1.bf16.msra.mxu0 0
        %539 = vmatprep.subr.bf16.mxu0 0
        %540 = vmatpush1.bf16.msra.mxu0 0
        %541 = vmatprep.subr.bf16.mxu0 0
        %542 = vmatpush1.bf16.msra.mxu0 0
        %543 = vmatprep.subr.bf16.mxu0 0
        %544 = vmatpush1.bf16.msra.mxu0 0
        %545 = vmatprep.subr.bf16.mxu0 0
        %546 = vmatpush1.bf16.msra.mxu0 0
        %547 = vmatprep.subr.bf16.mxu0 0
        %548 = vmatpush1.bf16.msra.mxu0 0
        %549 = vmatprep.mubr.bf16.mxu0 0
        %550 = vmatmul.mubr.bf16.gmra.mrb[0].mxu0 %v511
        %v551 = vpop.f32.mrb[0].mxu0
        %v552 = vadd.f32 %v502, %v551
        %v553 = vpop.f32.mrb[0].mxu0
        %v554 = vpop.f32.mrb[0].mxu0
        %v555 = vadd.f32 %v502, %v554
        %v556 = vpop.f32.mrb[0].mxu0
        %557 = vdwg.mxu0
        %v558 = vmul.f32 %v552, 0.25
        %v559 = vmul.f32 %v555, 0.25
        %v560 = vpack.c.bf16 %v559, %v558
        %v561 = vpack.c.bf16 %v555, %v552
        %563 = vrot.lane.b32.xlu0 %v561, 96
        %v564 = vpop.permute.xlu0 %563
        %vm565 = vcmask 130048
        %v567 = vsel %vm565, %v560, 0
        %v570 = vsel %vm565, %v564, 0
        %572 = vmatprep.subr.bf16.mxu0 0
        %573 = vmatpush1.bf16.xpose.msra.mxu0 %v570
        %574 = vmatprep.subr.bf16.mxu0 0
        %575 = vmatpush1.bf16.xpose.msra.mxu0 0
        %576 = vmatprep.subr.bf16.mxu0 0
        %577 = vmatpush1.bf16.xpose.msra.mxu0 0
        %578 = vmatprep.subr.bf16.mxu0 0
        %579 = vmatpush1.bf16.xpose.msra.mxu0 0
        %580 = vmatprep.subr.bf16.mxu0 0
        %581 = vmatpush1.bf16.xpose.msra.mxu0 0
        %582 = vmatprep.subr.bf16.mxu0 0
        %583 = vmatpush1.bf16.xpose.msra.mxu0 0
        %584 = vmatprep.subr.bf16.mxu0 0
        %585 = vmatpush1.bf16.xpose.msra.mxu0 0
        %586 = vmatprep.subr.bf16.mxu0 0
        %587 = vmatpush1.bf16.xpose.msra.mxu0 0
        %588 = vmatprep.subr.bf16.mxu0 0
        %589 = vmatpush1.bf16.xpose.msra.mxu0 0
        %590 = vmatprep.subr.bf16.mxu0 0
        %591 = vmatpush1.bf16.xpose.msra.mxu0 0
        %592 = vmatprep.subr.bf16.mxu0 0
        %593 = vmatpush1.bf16.xpose.msra.mxu0 0
        %594 = vmatprep.subr.bf16.mxu0 0
        %595 = vmatpush1.bf16.xpose.msra.mxu0 0
        %596 = vmatprep.subr.bf16.mxu0 0
        %597 = vmatpush1.bf16.xpose.msra.mxu0 0
        %598 = vmatprep.subr.bf16.mxu0 0
        %599 = vmatpush1.bf16.xpose.msra.mxu0 0
        %600 = vmatprep.subr.bf16.mxu0 0
        %601 = vmatpush1.bf16.xpose.msra.mxu0 0
        %602 = vmatprep.subr.bf16.mxu0 0
        %603 = vmatpush1.bf16.xpose.msra.mxu0 0
        %604 = vmatprep.mubr.bf16.mxu0 0
        %605 = vmatmul.mubr.bf16.gmra.mrb[0].mxu0 %v567
        %v606 = vpop.f32.mrb[0].mxu0
        %v607 = vadd.f32 %v494, %v606
        %v608 = vpop.f32.mrb[0].mxu0
        %v609 = vpop.f32.mrb[0].mxu0
        %v610 = vadd.f32 %v495, %v609
        %v611 = vpop.f32.mrb[0].mxu0
        %612 = vdwg.mxu0
        %v613 = vsel %vm565, %v607, -inf
        %614 = vmax.xlane.f32.xlu0 %v613
        %v615 = vpop.xlane.xlu0 %614
        %v616 = vsel %vm565, %v610, -inf
        %617 = vmax.xlane.f32.xlu0 %v616
        %v618 = vpop.xlane.xlu0 %617
        %v619 = vmax.f32 %v615, -1e+20
        %v620 = vmax.f32 %v618, -1e+20
        %v621 = vsub.f32 %v607, %v619
        %v622 = vsub.f32 %v610, %v620
        %v623 = vmul.f32 %v621, 1.442695
        %v624 = vpow.pop %v623
        %v625 = vmul.f32 %v622, 1.442695
        %v626 = vpow.pop %v625
        %v627 = vsel %vm565, %v624, 0.0
        %628 = vadd.xlane.f32.xlu0 %v627
        %v629 = vpop.xlane.xlu0 %628
        %v630 = vsel %vm565, %v626, 0.0
        %631 = vadd.xlane.f32.xlu0 %v630
        %v632 = vpop.xlane.xlu0 %631
        %vm633 = vcmp.gt.f32.partialorder %v629, 0.0
        %vm634 = vcmp.gt.f32.partialorder %v632, 0.0
        %v635 = vsel %vm633, %v629, 1.0
        %v636 = vsel %vm634, %v632, 1.0
        %v637 = vrcp.pop %v635
        %v638 = vrcp.pop %v636
        %v639 = vpack.c.bf16 %v626, %v624
        %640 = vrot.lane.b32.xlu0 %v561, 64
        %v641 = vpop.permute.xlu0 %640
        %v644 = vsel %vm565, %v639, 0
        %646 = vmatprep.subr.bf16.mxu0 0
        %647 = vmatpush1.bf16.msra.mxu0 %v641
        %648 = vmatprep.subr.bf16.mxu0 0
        %649 = vmatpush1.bf16.msra.mxu0 0
        %650 = vmatprep.subr.bf16.mxu0 0
        %651 = vmatpush1.bf16.msra.mxu0 0
        %652 = vmatprep.subr.bf16.mxu0 0
        %653 = vmatpush1.bf16.msra.mxu0 0
        %654 = vmatprep.subr.bf16.mxu0 0
        %655 = vmatpush1.bf16.msra.mxu0 0
        %656 = vmatprep.subr.bf16.mxu0 0
        %657 = vmatpush1.bf16.msra.mxu0 0
        %658 = vmatprep.subr.bf16.mxu0 0
        %659 = vmatpush1.bf16.msra.mxu0 0
        %660 = vmatprep.subr.bf16.mxu0 0
        %661 = vmatpush1.bf16.msra.mxu0 0
        %662 = vmatprep.subr.bf16.mxu0 0
        %663 = vmatpush1.bf16.msra.mxu0 0
        %664 = vmatprep.subr.bf16.mxu0 0
        %665 = vmatpush1.bf16.msra.mxu0 0
        %666 = vmatprep.subr.bf16.mxu0 0
        %667 = vmatpush1.bf16.msra.mxu0 0
        %668 = vmatprep.subr.bf16.mxu0 0
        %669 = vmatpush1.bf16.msra.mxu0 0
        %670 = vmatprep.subr.bf16.mxu0 0
        %671 = vmatpush1.bf16.msra.mxu0 0
        %672 = vmatprep.subr.bf16.mxu0 0
        %673 = vmatpush1.bf16.msra.mxu0 0
        %674 = vmatprep.subr.bf16.mxu0 0
        %675 = vmatpush1.bf16.msra.mxu0 0
        %676 = vmatprep.subr.bf16.mxu0 0
        %677 = vmatpush1.bf16.msra.mxu0 0
        %678 = vmatprep.mubr.bf16.mxu0 0
        %679 = vmatmul.mubr.bf16.gmra.mrb[0].mxu0 %v644
        %v680 = vpop.f32.mrb[0].mxu0
        %v681 = vadd.f32 0.0, %v680
        %v682 = vpop.f32.mrb[0].mxu0
        %v683 = vpop.f32.mrb[0].mxu0
        %v684 = vadd.f32 0.0, %v683
        %v685 = vpop.f32.mrb[0].mxu0
        %686 = vdwg.mxu0
        %v687 = vmul.f32 %v681, %v637
        %v688 = vmul.f32 %v684, %v638
        %690 = vrot.lane.b32.xlu0 %v560, 112
        %v691 = vpop.permute.xlu0 %690
        %692 = vrot.lane.b32.xlu0 %v561, 80
        %v693 = vpop.permute.xlu0 %692
        %v695 = vsel %vm565, %v691, 0
        %v698 = vsel %vm565, %v693, 0
        %700 = vmatprep.subr.bf16.mxu0 0
        %701 = vmatpush1.bf16.xpose.msra.mxu0 %v698
        %702 = vmatprep.subr.bf16.mxu0 0
        %703 = vmatpush1.bf16.xpose.msra.mxu0 0
        %704 = vmatprep.subr.bf16.mxu0 0
        %705 = vmatpush1.bf16.xpose.msra.mxu0 0
        %706 = vmatprep.subr.bf16.mxu0 0
        %707 = vmatpush1.bf16.xpose.msra.mxu0 0
        %708 = vmatprep.subr.bf16.mxu0 0
        %709 = vmatpush1.bf16.xpose.msra.mxu0 0
        %710 = vmatprep.subr.bf16.mxu0 0
        %711 = vmatpush1.bf16.xpose.msra.mxu0 0
        %712 = vmatprep.subr.bf16.mxu0 0
        %713 = vmatpush1.bf16.xpose.msra.mxu0 0
        %714 = vmatprep.subr.bf16.mxu0 0
        %715 = vmatpush1.bf16.xpose.msra.mxu0 0
        %716 = vmatprep.subr.bf16.mxu0 0
        %717 = vmatpush1.bf16.xpose.msra.mxu0 0
        %718 = vmatprep.subr.bf16.mxu0 0
        %719 = vmatpush1.bf16.xpose.msra.mxu0 0
        %720 = vmatprep.subr.bf16.mxu0 0
        %721 = vmatpush1.bf16.xpose.msra.mxu0 0
        %722 = vmatprep.subr.bf16.mxu0 0
        %723 = vmatpush1.bf16.xpose.msra.mxu0 0
        %724 = vmatprep.subr.bf16.mxu0 0
        %725 = vmatpush1.bf16.xpose.msra.mxu0 0
        %726 = vmatprep.subr.bf16.mxu0 0
        %727 = vmatpush1.bf16.xpose.msra.mxu0 0
        %728 = vmatprep.subr.bf16.mxu0 0
        %729 = vmatpush1.bf16.xpose.msra.mxu0 0
        %730 = vmatprep.subr.bf16.mxu0 0
        %731 = vmatpush1.bf16.xpose.msra.mxu0 0
        %732 = vmatprep.mubr.bf16.mxu0 0
        %733 = vmatmul.mubr.bf16.gmra.mrb[0].mxu0 %v695
        %v734 = vpop.f32.mrb[0].mxu0
        %v735 = vadd.f32 %v494, %v734
        %v736 = vpop.f32.mrb[0].mxu0
        %v737 = vpop.f32.mrb[0].mxu0
        %v738 = vadd.f32 %v495, %v737
        %v739 = vpop.f32.mrb[0].mxu0
        %740 = vdwg.mxu0
        %v741 = vsel %vm565, %v735, -inf
        %742 = vmax.xlane.f32.xlu0 %v741
        %v743 = vpop.xlane.xlu0 %742
        %v744 = vsel %vm565, %v738, -inf
        %745 = vmax.xlane.f32.xlu0 %v744
        %v746 = vpop.xlane.xlu0 %745
        %v747 = vmax.f32 %v743, -1e+20
        %v748 = vmax.f32 %v746, -1e+20
        %v749 = vsub.f32 %v735, %v747
        %v750 = vsub.f32 %v738, %v748
        %v751 = vmul.f32 %v749, 1.442695
        %v752 = vpow.pop %v751
        %v753 = vmul.f32 %v750, 1.442695
        %v754 = vpow.pop %v753
        %v755 = vsel %vm565, %v752, 0.0
        %756 = vadd.xlane.f32.xlu0 %v755
        %v757 = vpop.xlane.xlu0 %756
        %v758 = vsel %vm565, %v754, 0.0
        %759 = vadd.xlane.f32.xlu0 %v758
        %v760 = vpop.xlane.xlu0 %759
        %vm761 = vcmp.gt.f32.partialorder %v757, 0.0
        %vm762 = vcmp.gt.f32.partialorder %v760, 0.0
        %v763 = vsel %vm761, %v757, 1.0
        %v764 = vsel %vm762, %v760, 1.0
        %v765 = vrcp.pop %v763
        %v766 = vrcp.pop %v764
        %v767 = vpack.c.bf16 %v754, %v752
        %768 = vrot.lane.b32.xlu0 %v561, 48
        %v769 = vpop.permute.xlu0 %768
        %v772 = vsel %vm565, %v767, 0
        %774 = vmatprep.subr.bf16.mxu0 0
        %775 = vmatpush1.bf16.msra.mxu0 %v769
        %776 = vmatprep.subr.bf16.mxu0 0
        %777 = vmatpush1.bf16.msra.mxu0 0
        %778 = vmatprep.subr.bf16.mxu0 0
        %779 = vmatpush1.bf16.msra.mxu0 0
        %780 = vmatprep.subr.bf16.mxu0 0
        %781 = vmatpush1.bf16.msra.mxu0 0
        %782 = vmatprep.subr.bf16.mxu0 0
        %783 = vmatpush1.bf16.msra.mxu0 0
        %784 = vmatprep.subr.bf16.mxu0 0
        %785 = vmatpush1.bf16.msra.mxu0 0
        %786 = vmatprep.subr.bf16.mxu0 0
        %787 = vmatpush1.bf16.msra.mxu0 0
        %788 = vmatprep.subr.bf16.mxu0 0
        %789 = vmatpush1.bf16.msra.mxu0 0
        %790 = vmatprep.subr.bf16.mxu0 0
        %791 = vmatpush1.bf16.msra.mxu0 0
        %792 = vmatprep.subr.bf16.mxu0 0
        %793 = vmatpush1.bf16.msra.mxu0 0
        %794 = vmatprep.subr.bf16.mxu0 0
        %795 = vmatpush1.bf16.msra.mxu0 0
        %796 = vmatprep.subr.bf16.mxu0 0
        %797 = vmatpush1.bf16.msra.mxu0 0
        %798 = vmatprep.subr.bf16.mxu0 0
        %799 = vmatpush1.bf16.msra.mxu0 0
        %800 = vmatprep.subr.bf16.mxu0 0
        %801 = vmatpush1.bf16.msra.mxu0 0
        %802 = vmatprep.subr.bf16.mxu0 0
        %803 = vmatpush1.bf16.msra.mxu0 0
        %804 = vmatprep.subr.bf16.mxu0 0
        %805 = vmatpush1.bf16.msra.mxu0 0
        %806 = vmatprep.mubr.bf16.mxu0 0
        %807 = vmatmul.mubr.bf16.gmra.mrb[0].mxu0 %v772
        %v808 = vpop.f32.mrb[0].mxu0
        %v809 = vadd.f32 0.0, %v808
        %v810 = vpop.f32.mrb[0].mxu0
        %v811 = vpop.f32.mrb[0].mxu0
        %v812 = vadd.f32 0.0, %v811
        %v813 = vpop.f32.mrb[0].mxu0
        %814 = vdwg.mxu0
        %v815 = vmul.f32 %v809, %v765
        %v816 = vmul.f32 %v812, %v766
        %819 = vrot.lane.b32.xlu0 %v815, 16
        %v820 = vpop.permute.xlu0 %819
        %821 = vrot.lane.b32.xlu0 %v816, 16
        %v822 = vpop.permute.xlu0 %821
        %v825 = vsel %vm565, %v687, %v820
        %v826 = vsel %vm565, %v688, %v822
        %829 = vrot.lane.b32.xlu0 %v552, 32
        %v830 = vpop.permute.xlu0 %829
        %831 = vrot.lane.b32.xlu0 %v555, 32
        %v832 = vpop.permute.xlu0 %831
        %v835 = vadd.f32 %v825, %v830
        %v836 = vadd.f32 %v826, %v832
        %v837 = vpack.c.bf16 %v836, %v835
        %v838 = vld [vmem:[%s4] sm:$0xf]
        %v839 = vld [vmem:[%s4 + $0x4] sm:$0xf]
        %v840 = vld [vmem:[%s4 + $0x8] sm:$0xf]
        %v841 = vld [vmem:[%s4 + $0xc] sm:$0xf]
        %v842 = vld [vmem:[%s5] sm:$0x1]
        %v844 = vlaneseq
        %v845 = vshrl.u32 %v844, 7
        %v846 = vsub.s32 0, %v845
        %v847 = vrot.slane %v842, %v846
        %v853 = vunpack.c.l.b16 %v838
        %v854 = vunpack.c.l.b16 %v839
        %v855 = vunpack.c.l.b16 %v840
        %v856 = vunpack.c.l.b16 %v841
        %v857 = vpack.c.b16 %v854, %v853
        %v858 = vpack.c.b16 %v856, %v855
        %vm861 = vcmask 261120
        %v863 = vsel %vm861, %v837, 0
        %865 = vmatprep.subr.bf16.mxu0 0
        %866 = vmatpush1.bf16.msra.mxu0 %v857
        %867 = vmatprep.subr.bf16.mxu0 0
        %868 = vmatpush1.bf16.msra.mxu0 %v858
        %869 = vmatprep.subr.bf16.mxu0 0
        %870 = vmatpush1.bf16.msra.mxu0 0
        %871 = vmatprep.subr.bf16.mxu0 0
        %872 = vmatpush1.bf16.msra.mxu0 0
        %873 = vmatprep.subr.bf16.mxu0 0
        %874 = vmatpush1.bf16.msra.mxu0 0
        %875 = vmatprep.subr.bf16.mxu0 0
        %876 = vmatpush1.bf16.msra.mxu0 0
        %877 = vmatprep.subr.bf16.mxu0 0
        %878 = vmatpush1.bf16.msra.mxu0 0
        %879 = vmatprep.subr.bf16.mxu0 0
        %880 = vmatpush1.bf16.msra.mxu0 0
        %881 = vmatprep.subr.bf16.mxu0 0
        %882 = vmatpush1.bf16.msra.mxu0 0
        %883 = vmatprep.subr.bf16.mxu0 0
        %884 = vmatpush1.bf16.msra.mxu0 0
        %885 = vmatprep.subr.bf16.mxu0 0
        %886 = vmatpush1.bf16.msra.mxu0 0
        %887 = vmatprep.subr.bf16.mxu0 0
        %888 = vmatpush1.bf16.msra.mxu0 0
        %889 = vmatprep.subr.bf16.mxu0 0
        %890 = vmatpush1.bf16.msra.mxu0 0
        %891 = vmatprep.subr.bf16.mxu0 0
        %892 = vmatpush1.bf16.msra.mxu0 0
        %893 = vmatprep.subr.bf16.mxu0 0
        %894 = vmatpush1.bf16.msra.mxu0 0
        %895 = vmatprep.subr.bf16.mxu0 0
        %896 = vmatpush1.bf16.msra.mxu0 0
        %897 = vmatprep.mubr.bf16.mxu0 0
        %898 = vmatmul.mubr.bf16.gmra.mrb[0].mxu0 %v863
        %v899 = vpop.f32.mrb[0].mxu0
        %v900 = vadd.f32 %v847, %v899
        %v901 = vpop.f32.mrb[0].mxu0
        %v902 = vpop.f32.mrb[0].mxu0
        %v903 = vadd.f32 %v847, %v902
        %v904 = vpop.f32.mrb[0].mxu0
        %905 = vdwg.mxu0
        %v906 = vmul.f32 %v900, 0.17677669
        %v907 = vmul.f32 %v903, 0.17677669
        %v908 = vpack.c.bf16 %v907, %v906
        %v909 = vpack.c.bf16 %v903, %v900
        %911 = vrot.lane.b32.xlu0 %v909, 96
        %v912 = vpop.permute.xlu0 %911
        %v914 = vsel %vm861, %v908, 0
        %v917 = vsel %vm861, %v912, 0
        %919 = vmatprep.subr.bf16.mxu0 0
        %920 = vmatpush1.bf16.xpose.msra.mxu0 %v917
        %921 = vmatprep.subr.bf16.mxu0 0
        %922 = vmatpush1.bf16.xpose.msra.mxu0 0
        %923 = vmatprep.subr.bf16.mxu0 0
        %924 = vmatpush1.bf16.xpose.msra.mxu0 0
        %925 = vmatprep.subr.bf16.mxu0 0
        %926 = vmatpush1.bf16.xpose.msra.mxu0 0
        %927 = vmatprep.subr.bf16.mxu0 0
        %928 = vmatpush1.bf16.xpose.msra.mxu0 0
        %929 = vmatprep.subr.bf16.mxu0 0
        %930 = vmatpush1.bf16.xpose.msra.mxu0 0
        %931 = vmatprep.subr.bf16.mxu0 0
        %932 = vmatpush1.bf16.xpose.msra.mxu0 0
        %933 = vmatprep.subr.bf16.mxu0 0
        %934 = vmatpush1.bf16.xpose.msra.mxu0 0
        %935 = vmatprep.subr.bf16.mxu0 0
        %936 = vmatpush1.bf16.xpose.msra.mxu0 0
        %937 = vmatprep.subr.bf16.mxu0 0
        %938 = vmatpush1.bf16.xpose.msra.mxu0 0
        %939 = vmatprep.subr.bf16.mxu0 0
        %940 = vmatpush1.bf16.xpose.msra.mxu0 0
        %941 = vmatprep.subr.bf16.mxu0 0
        %942 = vmatpush1.bf16.xpose.msra.mxu0 0
        %943 = vmatprep.subr.bf16.mxu0 0
        %944 = vmatpush1.bf16.xpose.msra.mxu0 0
        %945 = vmatprep.subr.bf16.mxu0 0
        %946 = vmatpush1.bf16.xpose.msra.mxu0 0
        %947 = vmatprep.subr.bf16.mxu0 0
        %948 = vmatpush1.bf16.xpose.msra.mxu0 0
        %949 = vmatprep.subr.bf16.mxu0 0
        %950 = vmatpush1.bf16.xpose.msra.mxu0 0
        %951 = vmatprep.mubr.bf16.mxu0 0
        %952 = vmatmul.mubr.bf16.gmra.mrb[0].mxu0 %v914
        %v953 = vpop.f32.mrb[0].mxu0
        %v954 = vadd.f32 %v494, %v953
        %v955 = vpop.f32.mrb[0].mxu0
        %v956 = vpop.f32.mrb[0].mxu0
        %v957 = vadd.f32 %v495, %v956
        %v958 = vpop.f32.mrb[0].mxu0
        %959 = vdwg.mxu0
        %v960 = vsel %vm565, %v954, -inf
        %961 = vmax.xlane.f32.xlu0 %v960
        %v962 = vpop.xlane.xlu0 %961
        %v963 = vsel %vm565, %v957, -inf
        %964 = vmax.xlane.f32.xlu0 %v963
        %v965 = vpop.xlane.xlu0 %964
        %v966 = vmax.f32 %v962, -1e+20
        %v967 = vmax.f32 %v965, -1e+20
        %v968 = vsub.f32 %v954, %v966
        %v969 = vsub.f32 %v957, %v967
        %v970 = vmul.f32 %v968, 1.442695
        %v971 = vpow.pop %v970
        %v972 = vmul.f32 %v969, 1.442695
        %v973 = vpow.pop %v972
        %v974 = vsel %vm565, %v971, 0.0
        %975 = vadd.xlane.f32.xlu0 %v974
        %v976 = vpop.xlane.xlu0 %975
        %v977 = vsel %vm565, %v973, 0.0
        %978 = vadd.xlane.f32.xlu0 %v977
        %v979 = vpop.xlane.xlu0 %978
        %vm980 = vcmp.gt.f32.partialorder %v976, 0.0
        %vm981 = vcmp.gt.f32.partialorder %v979, 0.0
        %v982 = vsel %vm980, %v976, 1.0
        %v983 = vsel %vm981, %v979, 1.0
        %v984 = vrcp.pop %v982
        %v985 = vrcp.pop %v983
        %v986 = vpack.c.bf16 %v973, %v971
        %987 = vrot.lane.b32.xlu0 %v909, 64
        %v988 = vpop.permute.xlu0 %987
        %v991 = vsel %vm565, %v986, 0
        %993 = vmatprep.subr.bf16.mxu0 0
        %994 = vmatpush1.bf16.msra.mxu0 %v988
        %995 = vmatprep.subr.bf16.mxu0 0
        %996 = vmatpush1.bf16.msra.mxu0 0
        %997 = vmatprep.subr.bf16.mxu0 0
        %998 = vmatpush1.bf16.msra.mxu0 0
        %999 = vmatprep.subr.bf16.mxu0 0
        %1000 = vmatpush1.bf16.msra.mxu0 0
        %1001 = vmatprep.subr.bf16.mxu0 0
        %1002 = vmatpush1.bf16.msra.mxu0 0
        %1003 = vmatprep.subr.bf16.mxu0 0
        %1004 = vmatpush1.bf16.msra.mxu0 0
        %1005 = vmatprep.subr.bf16.mxu0 0
        %1006 = vmatpush1.bf16.msra.mxu0 0
        %1007 = vmatprep.subr.bf16.mxu0 0
        %1008 = vmatpush1.bf16.msra.mxu0 0
        %1009 = vmatprep.subr.bf16.mxu0 0
        %1010 = vmatpush1.bf16.msra.mxu0 0
        %1011 = vmatprep.subr.bf16.mxu0 0
        %1012 = vmatpush1.bf16.msra.mxu0 0
        %1013 = vmatprep.subr.bf16.mxu0 0
        %1014 = vmatpush1.bf16.msra.mxu0 0
        %1015 = vmatprep.subr.bf16.mxu0 0
        %1016 = vmatpush1.bf16.msra.mxu0 0
        %1017 = vmatprep.subr.bf16.mxu0 0
        %1018 = vmatpush1.bf16.msra.mxu0 0
        %1019 = vmatprep.subr.bf16.mxu0 0
        %1020 = vmatpush1.bf16.msra.mxu0 0
        %1021 = vmatprep.subr.bf16.mxu0 0
        %1022 = vmatpush1.bf16.msra.mxu0 0
        %1023 = vmatprep.subr.bf16.mxu0 0
        %1024 = vmatpush1.bf16.msra.mxu0 0
        %1025 = vmatprep.mubr.bf16.mxu0 0
        %1026 = vmatmul.mubr.bf16.gmra.mrb[0].mxu0 %v991
        %v1027 = vpop.f32.mrb[0].mxu0
        %v1028 = vadd.f32 0.0, %v1027
        %v1029 = vpop.f32.mrb[0].mxu0
        %v1030 = vpop.f32.mrb[0].mxu0
        %v1031 = vadd.f32 0.0, %v1030
        %v1032 = vpop.f32.mrb[0].mxu0
        %1033 = vdwg.mxu0
        %v1034 = vmul.f32 %v1028, %v984
        %v1035 = vmul.f32 %v1031, %v985
        %1038 = vrot.lane.b32.xlu0 %v900, 32
        %v1039 = vpop.permute.xlu0 %1038
        %1040 = vrot.lane.b32.xlu0 %v903, 32
        %v1041 = vpop.permute.xlu0 %1040
        %v1044 = vadd.f32 %v1034, %v1039
        %v1045 = vadd.f32 %v1035, %v1041
        %v1046 = vpack.c.bf16 %v1045, %v1044
        %v1047 = vld [vmem:[#allocation5] sm:$0xf]
        %v1048 = vld [vmem:[#allocation5 + $0x4] sm:$0xf]
        %v1049 = vld [vmem:[#allocation5 + $0x8] sm:$0xf]
        %v1050 = vld [vmem:[#allocation5 + $0xc] sm:$0xf]
        %v1051 = vld [vmem:[%s7] sm:$0x1]
        %v1053 = vlaneseq
        %v1054 = vshrl.u32 %v1053, 7
        %v1055 = vsub.s32 0, %v1054
        %v1056 = vrot.slane %v1051, %v1055
        %v1062 = vunpack.c.l.b16 %v1047
        %v1063 = vunpack.c.l.b16 %v1048
        %v1064 = vunpack.c.l.b16 %v1049
        %v1065 = vunpack.c.l.b16 %v1050
        %v1066 = vpack.c.b16 %v1063, %v1062
        %v1067 = vpack.c.b16 %v1065, %v1064
        %v1071 = vsel %vm861, %v1046, 0
        %1073 = vmatprep.subr.bf16.mxu0 0
        %1074 = vmatpush1.bf16.msra.mxu0 %v1066
        %1075 = vmatprep.subr.bf16.mxu0 0
        %1076 = vmatpush1.bf16.msra.mxu0 %v1067
        %1077 = vmatprep.subr.bf16.mxu0 0
        %1078 = vmatpush1.bf16.msra.mxu0 0
        %1079 = vmatprep.subr.bf16.mxu0 0
        %1080 = vmatpush1.bf16.msra.mxu0 0
        %1081 = vmatprep.subr.bf16.mxu0 0
        %1082 = vmatpush1.bf16.msra.mxu0 0
        %1083 = vmatprep.subr.bf16.mxu0 0
        %1084 = vmatpush1.bf16.msra.mxu0 0
        %1085 = vmatprep.subr.bf16.mxu0 0
        %1086 = vmatpush1.bf16.msra.mxu0 0
        %1087 = vmatprep.subr.bf16.mxu0 0
        %1088 = vmatpush1.bf16.msra.mxu0 0
        %1089 = vmatprep.subr.bf16.mxu0 0
        %1090 = vmatpush1.bf16.msra.mxu0 0
        %1091 = vmatprep.subr.bf16.mxu0 0
        %1092 = vmatpush1.bf16.msra.mxu0 0
        %1093 = vmatprep.subr.bf16.mxu0 0
        %1094 = vmatpush1.bf16.msra.mxu0 0
        %1095 = vmatprep.subr.bf16.mxu0 0
        %1096 = vmatpush1.bf16.msra.mxu0 0
        %1097 = vmatprep.subr.bf16.mxu0 0
        %1098 = vmatpush1.bf16.msra.mxu0 0
        %1099 = vmatprep.subr.bf16.mxu0 0
        %1100 = vmatpush1.bf16.msra.mxu0 0
        %1101 = vmatprep.subr.bf16.mxu0 0
        %1102 = vmatpush1.bf16.msra.mxu0 0
        %1103 = vmatprep.subr.bf16.mxu0 0
        %1104 = vmatpush1.bf16.msra.mxu0 0
        %1105 = vmatprep.mubr.bf16.mxu0 0
        %1106 = vmatmul.mubr.bf16.gmra.mrb[0].mxu0 %v1071
        %v1107 = vpop.f32.mrb[0].mxu0
        %v1108 = vadd.f32 %v1056, %v1107
        %v1109 = vpop.f32.mrb[0].mxu0
        %v1110 = vpop.f32.mrb[0].mxu0
        %v1111 = vadd.f32 %v1056, %v1110
        %v1112 = vpop.f32.mrb[0].mxu0
        %1113 = vdwg.mxu0
        %v1114 = vtanh.pop %v1108
        %v1115 = vtanh.pop %v1111
        %v1116 = vsub.f32 %v1108, %v1114
        %v1117 = vsub.f32 %v1111, %v1115
        %v1118 = vpack.c.bf16 %v1117, %v1116
        %v1119 = vld [vmem:[#allocation7] sm:$0xf]
        %v1120 = vld [vmem:[#allocation7 + $0x4] sm:$0xf]
        %v1121 = vld [vmem:[#allocation7 + $0x8] sm:$0xf]
        %v1122 = vld [vmem:[#allocation7 + $0xc] sm:$0xf]
        %v1123 = vld [vmem:[#allocation7 + $0x10] sm:$0xf]
        %v1124 = vld [vmem:[#allocation7 + $0x14] sm:$0xf]
        %v1125 = vld [vmem:[#allocation7 + $0x18] sm:$0xf]
        %v1126 = vld [vmem:[#allocation7 + $0x1c] sm:$0xf]
        %v1127 = vld [vmem:[#allocation7 + $0x20] sm:$0xf]
        %v1128 = vld [vmem:[#allocation7 + $0x24] sm:$0xf]
        %v1129 = vld [vmem:[#allocation7 + $0x28] sm:$0xf]
        %v1130 = vld [vmem:[#allocation7 + $0x2c] sm:$0xf]
        %v1131 = vld [vmem:[#allocation7 + $0x30] sm:$0xf]
        %v1132 = vld [vmem:[#allocation7 + $0x34] sm:$0xf]
        %v1133 = vld [vmem:[#allocation7 + $0x38] sm:$0xf]
        %v1134 = vld [vmem:[#allocation7 + $0x3c] sm:$0xf]
        %v1135 = vld [vmem:[%s9] sm:$0x1]
        %v1137 = vlaneseq
        %v1138 = vshrl.u32 %v1137, 7
        %v1139 = vsub.s32 0, %v1138
        %v1140 = vrot.slane %v1135, %v1139
        %v1158 = vunpack.c.l.b16 %v1119
        %v1159 = vunpack.c.l.b16 %v1120
        %v1160 = vunpack.c.l.b16 %v1121
        %v1161 = vunpack.c.l.b16 %v1122
        %v1162 = vunpack.c.l.b16 %v1123
        %v1163 = vunpack.c.l.b16 %v1124
        %v1164 = vunpack.c.l.b16 %v1125
        %v1165 = vunpack.c.l.b16 %v1126
        %v1166 = vunpack.c.l.b16 %v1127
        %v1167 = vunpack.c.l.b16 %v1128
        %v1168 = vunpack.c.l.b16 %v1129
        %v1169 = vunpack.c.l.b16 %v1130
        %v1170 = vunpack.c.l.b16 %v1131
        %v1171 = vunpack.c.l.b16 %v1132
        %v1172 = vunpack.c.l.b16 %v1133
        %v1173 = vunpack.c.l.b16 %v1134
        %v1174 = vpack.c.b16 %v1159, %v1158
        %v1175 = vpack.c.b16 %v1161, %v1160
        %v1176 = vpack.c.b16 %v1163, %v1162
        %v1177 = vpack.c.b16 %v1165, %v1164
        %v1178 = vpack.c.b16 %v1167, %v1166
        %v1179 = vpack.c.b16 %v1169, %v1168
        %v1180 = vpack.c.b16 %v1171, %v1170
        %v1181 = vpack.c.b16 %v1173, %v1172
        %1190 = vmatprep.subr.bf16.mxu0 0
        %1191 = vmatpush1.bf16.msra.mxu0 %v1174
        %1192 = vmatprep.subr.bf16.mxu0 0
        %1193 = vmatpush1.bf16.msra.mxu0 %v1175
        %1194 = vmatprep.subr.bf16.mxu0 0
        %1195 = vmatpush1.bf16.msra.mxu0 %v1176
        %1196 = vmatprep.subr.bf16.mxu0 0
        %1197 = vmatpush1.bf16.msra.mxu0 %v1177
        %1198 = vmatprep.subr.bf16.mxu0 0
        %1199 = vmatpush1.bf16.msra.mxu0 %v1178
        %1200 = vmatprep.subr.bf16.mxu0 0
        %1201 = vmatpush1.bf16.msra.mxu0 %v1179
        %1202 = vmatprep.subr.bf16.mxu0 0
        %1203 = vmatpush1.bf16.msra.mxu0 %v1180
        %1204 = vmatprep.subr.bf16.mxu0 0
        %1205 = vmatpush1.bf16.msra.mxu0 %v1181
        %1206 = vmatprep.subr.bf16.mxu0 0
        %1207 = vmatpush1.bf16.msra.mxu0 0
        %1208 = vmatprep.subr.bf16.mxu0 0
        %1209 = vmatpush1.bf16.msra.mxu0 0
        %1210 = vmatprep.subr.bf16.mxu0 0
        %1211 = vmatpush1.bf16.msra.mxu0 0
        %1212 = vmatprep.subr.bf16.mxu0 0
        %1213 = vmatpush1.bf16.msra.mxu0 0
        %1214 = vmatprep.subr.bf16.mxu0 0
        %1215 = vmatpush1.bf16.msra.mxu0 0
        %1216 = vmatprep.subr.bf16.mxu0 0
        %1217 = vmatpush1.bf16.msra.mxu0 0
        %1218 = vmatprep.subr.bf16.mxu0 0
        %1219 = vmatpush1.bf16.msra.mxu0 0
        %1220 = vmatprep.subr.bf16.mxu0 0
        %1221 = vmatpush1.bf16.msra.mxu0 0
        %1222 = vmatprep.mubr.bf16.mxu0 0
        %1223 = vmatmul.mubr.bf16.gmra.mrb[0].mxu0 %v1118
        %v1224 = vpop.f32.mrb[0].mxu0
        %v1225 = vadd.f32 %v1140, %v1224
        %v1226 = vpop.f32.mrb[0].mxu0
        %v1227 = vpop.f32.mrb[0].mxu0
        %v1228 = vadd.f32 %v1140, %v1227
        %v1229 = vpop.f32.mrb[0].mxu0
        %1230 = vdwg.mxu0
        %v1231 = vtanh.pop %v1225
        %v1232 = vtanh.pop %v1228
        %v1233 = vsub.f32 %v1225, %v1231
        %v1234 = vsub.f32 %v1228, %v1232
        %v1235 = vpack.c.bf16 %v1234, %v1233
        %v1236 = vld [vmem:[#allocation8] sm:$0xf]
        %v1237 = vld [vmem:[#allocation8 + $0x4] sm:$0xf]
        %v1238 = vld [vmem:[#allocation8 + $0x8] sm:$0xf]
        %v1239 = vld [vmem:[#allocation8 + $0xc] sm:$0xf]
        %v1240 = vld [vmem:[#allocation8 + $0x10] sm:$0xf]
        %v1241 = vld [vmem:[#allocation8 + $0x14] sm:$0xf]
        %v1242 = vld [vmem:[#allocation8 + $0x18] sm:$0xf]
        %v1243 = vld [vmem:[#allocation8 + $0x1c] sm:$0xf]
        %v1244 = vld [vmem:[#allocation8 + $0x20] sm:$0xf]
        %v1245 = vld [vmem:[#allocation8 + $0x24] sm:$0xf]
        %v1246 = vld [vmem:[#allocation8 + $0x28] sm:$0xf]
        %v1247 = vld [vmem:[#allocation8 + $0x2c] sm:$0xf]
        %v1248 = vld [vmem:[#allocation8 + $0x30] sm:$0xf]
        %v1249 = vld [vmem:[#allocation8 + $0x34] sm:$0xf]
        %v1250 = vld [vmem:[#allocation8 + $0x38] sm:$0xf]
        %v1251 = vld [vmem:[#allocation8 + $0x3c] sm:$0xf]
        %v1252 = vld [vmem:[%s11] sm:$0x1]
        %v1254 = vlaneseq
        %v1255 = vshrl.u32 %v1254, 7
        %v1256 = vsub.s32 0, %v1255
        %v1257 = vrot.slane %v1252, %v1256
        %v1275 = vunpack.c.l.b16 %v1236
        %v1276 = vunpack.c.l.b16 %v1237
        %v1277 = vunpack.c.l.b16 %v1238
        %v1278 = vunpack.c.l.b16 %v1239
        %v1279 = vunpack.c.l.b16 %v1240
        %v1280 = vunpack.c.l.b16 %v1241
        %v1281 = vunpack.c.l.b16 %v1242
        %v1282 = vunpack.c.l.b16 %v1243
        %v1283 = vunpack.c.l.b16 %v1244
        %v1284 = vunpack.c.l.b16 %v1245
        %v1285 = vunpack.c.l.b16 %v1246
        %v1286 = vunpack.c.l.b16 %v1247
        %v1287 = vunpack.c.l.b16 %v1248
        %v1288 = vunpack.c.l.b16 %v1249
        %v1289 = vunpack.c.l.b16 %v1250
        %v1290 = vunpack.c.l.b16 %v1251
        %v1291 = vpack.c.b16 %v1276, %v1275
        %v1292 = vpack.c.b16 %v1278, %v1277
        %v1293 = vpack.c.b16 %v1280, %v1279
        %v1294 = vpack.c.b16 %v1282, %v1281
        %v1295 = vpack.c.b16 %v1284, %v1283
        %v1296 = vpack.c.b16 %v1286, %v1285
        %v1297 = vpack.c.b16 %v1288, %v1287
        %v1298 = vpack.c.b16 %v1290, %v1289
        %1307 = vmatprep.subr.bf16.mxu0 0
        %1308 = vmatpush1.bf16.msra.mxu0 %v1291
        %1309 = vmatprep.subr.bf16.mxu0 0
        %1310 = vmatpush1.bf16.msra.mxu0 %v1292
        %1311 = vmatprep.subr.bf16.mxu0 0
        %1312 = vmatpush1.bf16.msra.mxu0 %v1293
        %1313 = vmatprep.subr.bf16.mxu0 0
        %1314 = vmatpush1.bf16.msra.mxu0 %v1294
        %1315 = vmatprep.subr.bf16.mxu0 0
        %1316 = vmatpush1.bf16.msra.mxu0 %v1295
        %1317 = vmatprep.subr.bf16.mxu0 0
        %1318 = vmatpush1.bf16.msra.mxu0 %v1296
        %1319 = vmatprep.subr.bf16.mxu0 0
        %1320 = vmatpush1.bf16.msra.mxu0 %v1297
        %1321 = vmatprep.subr.bf16.mxu0 0
        %1322 = vmatpush1.bf16.msra.mxu0 %v1298
        %1323 = vmatprep.subr.bf16.mxu0 0
        %1324 = vmatpush1.bf16.msra.mxu0 0
        %1325 = vmatprep.subr.bf16.mxu0 0
        %1326 = vmatpush1.bf16.msra.mxu0 0
        %1327 = vmatprep.subr.bf16.mxu0 0
        %1328 = vmatpush1.bf16.msra.mxu0 0
        %1329 = vmatprep.subr.bf16.mxu0 0
        %1330 = vmatpush1.bf16.msra.mxu0 0
        %1331 = vmatprep.subr.bf16.mxu0 0
        %1332 = vmatpush1.bf16.msra.mxu0 0
        %1333 = vmatprep.subr.bf16.mxu0 0
        %1334 = vmatpush1.bf16.msra.mxu0 0
        %1335 = vmatprep.subr.bf16.mxu0 0
        %1336 = vmatpush1.bf16.msra.mxu0 0
        %1337 = vmatprep.subr.bf16.mxu0 0
        %1338 = vmatpush1.bf16.msra.mxu0 0
        %1339 = vmatprep.mubr.bf16.mxu0 0
        %1340 = vmatmul.mubr.bf16.gmra.mrb[0].mxu0 %v1235
        %v1341 = vpop.f32.mrb[0].mxu0
        %v1342 = vadd.f32 %v1257, %v1341
        %v1343 = vpop.f32.mrb[0].mxu0
        %v1344 = vpop.f32.mrb[0].mxu0
        %v1345 = vadd.f32 %v1257, %v1344
        %v1346 = vpop.f32.mrb[0].mxu0
        %1347 = vdwg.mxu0
        %1348 = vst [vmem:[%s478] sm:$0xff] %v1342
        %1349 = vst [vmem:[%s478 + $0x8] sm:$0xff] %v1345
        %s1350 = sand.u32 %s299, 1
        %s1351 = scalar_lea.sflag [#allocation4], %s1350
        %s1352 = sand.u32 %s299, 1
        %s1353 = smul.addr %s1352, 16
        %s1354 = scalar_lea.vmem [#allocation10], %s1353
        // Predicated region
        $region85: #{tpu_custom_call.1} parent=67 // pred_check
          %p1355 = pneg %p309
        $region86: #{tpu_custom_call.1} parent=67 // pred_check_branch
          %1357 = sbr.rel (%p1355) target = $region88
        $region87: #{tpu_custom_call.1} parent=67 // pred_region
          %s1359 = ssub.s32 256, 256
          %1360 = vsyncadd %s1351, %s1359
          %s1361 = smul.addr %s29, 2
          %s1362 = smul.addr %s1361, 128
          %s1363 = scalar_lea.hbm %s12, %s1362
          %s1364 = sshll.u32 %s1354, 4
          %s1365 = int_to_ptr.vmem [resolvable:$true] %s1364
          %1370 = dma.vmem_to_hbm [thread:$0]  %s1365, 256, %s1363, %s1351, 128, 128, 8
        $region88: #{tpu_custom_call.1} parent=67 // pred_fallthru
          _
      $region68: #{tpu_custom_call.1} parent=5 // pred_fallthru
        _
      %p1371 = scmp.le.s32.totalorder 2, %s24
      // Predicated region
      $region89: #{tpu_custom_call.1} parent=5 // pred_check
        %p1372 = pneg %p1371
      $region90: #{tpu_custom_call.1} parent=5 // pred_check_branch
        %1374 = sbr.rel (%p1372) target = $region92
      $region91: #{tpu_custom_call.1} parent=5 // pred_region
        %s1375 = ssub.s32 %s24, 2
        // Predicated region
        $region93: #{tpu_custom_call.1} parent=91 // pred_check
          %p1376 = pneg %p315
        $region94: #{tpu_custom_call.1} parent=91 // pred_check_branch
          %1378 = sbr.rel (%p1376) target = $region96
        $region95: #{tpu_custom_call.1} parent=91 // pred_region
          %s1379 = sand.u32 %s300, 1
          %s1380 = scalar_lea.sflag [#allocation4], %s1379
          %s1381 = sand.u32 %s300, 1
          %s1382 = smul.addr %s1381, 16
          %s1383 = scalar_lea.vmem [#allocation10], %s1382
          %1384 = dma.done %s1380, 256
        $region96: #{tpu_custom_call.1} parent=91 // pred_fallthru
          _
      $region92: #{tpu_custom_call.1} parent=5 // pred_fallthru
        _
    $region6: #{tpu_custom_call.1} parent=1 // loop_footer
      %s28 = sadd.s32 1, %s24
    $region7: #{tpu_custom_call.1} parent=1 // loop_footer_branch
      %23 = sbr.rel target = $region3
    $region8: #{tpu_custom_call.1} parent=1 // loop_exit
      _
    %1385 = vsyncpa [#allocation3], 1
    %s1386 = scalar_lea.sflag [#allocation3], 1
    %1387 = vsyncpa %s1386, 1
    %1388 = vsyncpa [#allocation6], 1
    %1389 = vsyncpa [#allocation9], 1
    %1390 = vsyncpa [#allocation4], 1
    %s1391 = scalar_lea.sflag [#allocation4], 1
    %1392 = vsyncpa %s1391, 1

</llo_original>
